<compile_context>
chip_gen: v5e
topology: v5e:2x2
jax: 0.10.0
libtpu: 0.0.40
codegen_flags: <defaults>
</compile_context>

<pallas_src>
import functools

import jax
import jax.numpy as jnp
from jax.experimental import pallas as pl
from jax.experimental.pallas import tpu as pltpu


def _lstm_fc_kernel(x_ref,                        # (T*B, D) f32, time-major
                    wih0_ref, whh0_ref, b0_ref,   # (D,4H) (H,4H) bf16, (1,4H) f32
                    wih1_ref, whh1_ref, b1_ref,   # (H,4H) (H,4H) bf16, (1,4H) f32
                    wfc_ref, bfc_ref,             # (H,O) bf16, (1,O) f32
                    out_ref,                      # (B, O) f32
                    *, B, T):
    H = whh0_ref.shape[0]
    mx = jnp.bfloat16   # MXU operand dtype; accumulation stays f32 everywhere

    # ---- hoisted layer-0 input projection: one batched matmul, bias folded in.
    ih_all = (jnp.dot(x_ref[...].astype(mx), wih0_ref[...],
                      preferred_element_type=jnp.float32)
              + b0_ref[...])                          # (T*B, 4H) f32
    ih_all = ih_all.reshape(T, B, 4 * H)              # time-major: ih_all[t] is
                                                      # a contiguous sublane slice

    # Recurrent weights read once; bias broadcast once (no per-iter broadcast).
    whh0 = whh0_ref[...]                              # (H, 4H) bf16
    wih1 = wih1_ref[...]                              # (H, 4H) bf16
    whh1 = whh1_ref[...]                              # (H, 4H) bf16
    b1 = jnp.broadcast_to(b1_ref[...], (B, 4 * H))    # (B, 4H) f32

    def activ(gates):
        # Full-vreg activations: 2 EUP pushes per cell instead of 4 (f32 math).
        sg = jax.nn.sigmoid(gates)
        th = jnp.tanh(gates)
        i = sg[:, 0 * H:1 * H]
        f = sg[:, 1 * H:2 * H]
        g = th[:, 2 * H:3 * H]
        o = sg[:, 3 * H:4 * H]
        return i, f, g, o

    # ---- peeled t = 0: zero initial state makes hh dots and f*c terms dead.
    i0, _, gg0, o0 = activ(ih_all[0])
    c0 = i0 * gg0
    h0 = o0 * jnp.tanh(c0)

    g1 = jnp.dot(h0.astype(mx), wih1, preferred_element_type=jnp.float32) + b1
    i1, _, gg1, o1 = activ(g1)
    c1 = i1 * gg1
    h1 = o1 * jnp.tanh(c1)

    # ---- remaining timesteps, fully unrolled (T is small and static);
    #      h/c carried as values in vregs.
    for t in range(1, T):
        # layer 0: input projection precomputed -> 1 MXU op on the serial chain
        g0 = (jnp.dot(h0.astype(mx), whh0, preferred_element_type=jnp.float32)
              + ih_all[t])
        i0, f0, gg0, o0 = activ(g0)
        c0 = f0 * c0 + i0 * gg0
        h0 = o0 * jnp.tanh(c0)

        # layer 1: two separate small dots -> no lane concat on the chain
        g1 = (jnp.dot(h0.astype(mx), wih1, preferred_element_type=jnp.float32)
              + jnp.dot(h1.astype(mx), whh1, preferred_element_type=jnp.float32)
              + b1)
        i1, f1, gg1, o1 = activ(g1)
        c1 = f1 * c1 + i1 * gg1
        h1 = o1 * jnp.tanh(c1)

    # fc applied to the last-timestep hidden state of the top layer
    out_ref[...] = (jnp.dot(h1.astype(mx), wfc_ref[...],
                            preferred_element_type=jnp.float32)
                    + bfc_ref[...])


def rnn_forward(x, params):
    """x: (B, T, D) f32 -> (B, O) f32."""
    B, T, D = x.shape
    O = params["wfc"].shape[1]

    # Time-major row order (row = t*B + b): the wrapper transpose of this tiny
    # array is free and makes the per-step ih read a contiguous sublane slice.
    x2d = x.transpose(1, 0, 2).reshape(T * B, D)

    kernel = functools.partial(_lstm_fc_kernel, B=B, T=T)
    vmem_spec = pl.BlockSpec(memory_space=pltpu.MemorySpace.VMEM)

    return pl.pallas_call(
        kernel,
        out_shape=jax.ShapeDtypeStruct((B, O), jnp.float32),
        in_specs=[vmem_spec] * 9,
        out_specs=vmem_spec,
    )(x2d,
      params["wih0"], params["whh0"], params["b0"],
      params["wih1"], params["whh1"], params["b1"],
      params["wfc"], params["bfc"])


def init_params(key, input_size, hidden_size, output_size,
                weight_dtype=jnp.bfloat16):
    """PyTorch-style U(-1/sqrt(H), 1/sqrt(H)) init.  Weights stored transposed
    for right-multiplication (x @ W); gate order [i, f, g, o] preserved.
    Weights are stored in `weight_dtype` (bf16 by default: MXU-native on
    v6e/v7x, valid MXU operand on v5e); biases and all activations/state stay
    f32 (v5e VPU/EUP have no bf16), accumulation is forced f32 in-kernel.
    Results therefore differ from a bit-exact f32 PyTorch LSTM at roughly bf16
    matmul tolerance; this is a deliberate perf/precision trade."""
    H, D, O = hidden_size, input_size, output_size
    k = 1.0 / jnp.sqrt(jnp.float32(H))
    keys = jax.random.split(key, 10)

    def w(kk, shape):   # matmul weights -> weight_dtype
        return jax.random.uniform(kk, shape, jnp.float32, -k, k).astype(weight_dtype)

    def b(kk, shape):   # biases stay f32
        return jax.random.uniform(kk, shape, jnp.float32, -k, k)

    # layer 0
    wih0 = w(keys[0], (D, 4 * H))
    whh0 = w(keys[1], (H, 4 * H))
    b0 = b(keys[2], (1, 4 * H)) + b(keys[3], (1, 4 * H))      # b_ih + b_hh
    # layer 1 (kept as two separate matrices: no in-kernel lane concat needed)
    wih1 = w(keys[4], (H, 4 * H))
    whh1 = w(keys[5], (H, 4 * H))
    b1 = b(keys[6], (1, 4 * H)) + b(keys[7], (1, 4 * H))
    # fc
    wfc = w(keys[8], (H, O))
    bfc = b(keys[9], (1, O))

    return dict(wih0=wih0, whh0=whh0, b0=b0,
                wih1=wih1, whh1=whh1, b1=b1, wfc=wfc, bfc=bfc)


if __name__ == "__main__":
    # batch=2, seq=8, input=16, hidden == nodes == 32, output=4
    B, T, D, H, O = 2, 8, 16, 32, 4

    key = jax.random.PRNGKey(0)
    kx, kp = jax.random.split(key)
    x = jax.random.normal(kx, (B, T, D), jnp.float32)
    params = init_params(kp, D, H, O)

    out = jax.jit(rnn_forward)(x, params)
    out = jax.block_until_ready(out)
    assert out.shape == (B, O) and out.dtype == jnp.float32
    print("KERNEL_OK")
</pallas_src>

<mosaic_0001>
module attributes {stable_mosaic.version = 11 : i64} {
  func.func @_lstm_fc_kernel(%arg0: memref<16x16xf32, #tpu.memory_space<vmem>>, %arg1: memref<16x128xbf16, #tpu.memory_space<vmem>>, %arg2: memref<32x128xbf16, #tpu.memory_space<vmem>>, %arg3: memref<1x128xf32, #tpu.memory_space<vmem>>, %arg4: memref<32x128xbf16, #tpu.memory_space<vmem>>, %arg5: memref<32x128xbf16, #tpu.memory_space<vmem>>, %arg6: memref<1x128xf32, #tpu.memory_space<vmem>>, %arg7: memref<32x4xbf16, #tpu.memory_space<vmem>>, %arg8: memref<1x4xf32, #tpu.memory_space<vmem>>, %arg9: memref<2x4xf32, #tpu.memory_space<vmem>>) attributes {dimension_semantics = [], scalar_prefetch = 0 : i64, scratch_operands = 0 : i64, tpu.core_type = #tpu.core_type<tc>} {
    %c0 = arith.constant 0 : index
    %c0_0 = arith.constant 0 : index
    %0 = vector.load %arg0[%c0, %c0_0] : memref<16x16xf32, #tpu.memory_space<vmem>>, vector<16x16xf32>
    %1 = arith.truncf %0 : vector<16x16xf32> to vector<16x16xbf16>
    %c0_1 = arith.constant 0 : index
    %c0_2 = arith.constant 0 : index
    %2 = vector.load %arg1[%c0_1, %c0_2] : memref<16x128xbf16, #tpu.memory_space<vmem>>, vector<16x128xbf16>
    %cst = arith.constant dense<0.000000e+00> : vector<16x128xf32>
    %3 = tpu.matmul %1, %2, %cst {dimension_numbers = #tpu.dot_dimension_numbers<[1], [0], [0], [1], [0, 0, 1, 1], [], []>} : vector<16x16xbf16>, vector<16x128xbf16>, vector<16x128xf32> -> vector<16x128xf32>
    %c0_3 = arith.constant 0 : index
    %c0_4 = arith.constant 0 : index
    %4 = vector.load %arg3[%c0_3, %c0_4] : memref<1x128xf32, #tpu.memory_space<vmem>>, vector<1x128xf32>
    %5 = vector.broadcast %4 : vector<1x128xf32> to vector<16x128xf32>
    %6 = arith.addf %3, %5 : vector<16x128xf32>
    %7 = vector.shape_cast %6 : vector<16x128xf32> to vector<8x2x128xf32>
    %c0_5 = arith.constant 0 : index
    %c0_6 = arith.constant 0 : index
    %8 = vector.load %arg2[%c0_5, %c0_6] : memref<32x128xbf16, #tpu.memory_space<vmem>>, vector<32x128xbf16>
    %c0_7 = arith.constant 0 : index
    %c0_8 = arith.constant 0 : index
    %9 = vector.load %arg4[%c0_7, %c0_8] : memref<32x128xbf16, #tpu.memory_space<vmem>>, vector<32x128xbf16>
    %c0_9 = arith.constant 0 : index
    %c0_10 = arith.constant 0 : index
    %10 = vector.load %arg5[%c0_9, %c0_10] : memref<32x128xbf16, #tpu.memory_space<vmem>>, vector<32x128xbf16>
    %c0_11 = arith.constant 0 : index
    %c0_12 = arith.constant 0 : index
    %11 = vector.load %arg6[%c0_11, %c0_12] : memref<1x128xf32, #tpu.memory_space<vmem>>, vector<1x128xf32>
    %12 = vector.shape_cast %11 : vector<1x128xf32> to vector<1x128xf32>
    %13 = vector.broadcast %12 : vector<1x128xf32> to vector<2x128xf32>
    %14 = vector.extract_strided_slice %7 {offsets = [0, 0, 0], sizes = [1, 2, 128], strides = [1, 1, 1]} : vector<8x2x128xf32> to vector<1x2x128xf32>
    %15 = vector.shape_cast %14 : vector<1x2x128xf32> to vector<2x128xf32>
    %16 = arith.negf %15 : vector<2x128xf32>
    %17 = math.exp %16 : vector<2x128xf32>
    %cst_13 = arith.constant 1.000000e+00 : f32
    %18 = vector.broadcast %cst_13 : f32 to vector<2x128xf32>
    %19 = arith.addf %18, %17 : vector<2x128xf32>
    %20 = arith.divf %18, %19 : vector<2x128xf32>
    %21 = math.tanh %15 : vector<2x128xf32>
    %22 = vector.extract_strided_slice %20 {offsets = [0, 0], sizes = [2, 32], strides = [1, 1]} : vector<2x128xf32> to vector<2x32xf32>
    %23 = vector.extract_strided_slice %21 {offsets = [0, 64], sizes = [2, 32], strides = [1, 1]} : vector<2x128xf32> to vector<2x32xf32>
    %24 = vector.extract_strided_slice %20 {offsets = [0, 96], sizes = [2, 32], strides = [1, 1]} : vector<2x128xf32> to vector<2x32xf32>
    %25 = arith.mulf %22, %23 : vector<2x32xf32>
    %26 = math.tanh %25 : vector<2x32xf32>
    %27 = arith.mulf %24, %26 : vector<2x32xf32>
    %28 = arith.truncf %27 : vector<2x32xf32> to vector<2x32xbf16>
    %cst_14 = arith.constant dense<0.000000e+00> : vector<2x128xf32>
    %29 = tpu.matmul %28, %9, %cst_14 {dimension_numbers = #tpu.dot_dimension_numbers<[1], [0], [0], [1], [0, 0, 1, 1], [], []>} : vector<2x32xbf16>, vector<32x128xbf16>, vector<2x128xf32> -> vector<2x128xf32>
    %30 = arith.addf %29, %13 : vector<2x128xf32>
    %31 = arith.negf %30 : vector<2x128xf32>
    %32 = math.exp %31 : vector<2x128xf32>
    %cst_15 = arith.constant 1.000000e+00 : f32
    %33 = vector.broadcast %cst_15 : f32 to vector<2x128xf32>
    %34 = arith.addf %33, %32 : vector<2x128xf32>
    %35 = arith.divf %33, %34 : vector<2x128xf32>
    %36 = math.tanh %30 : vector<2x128xf32>
    %37 = vector.extract_strided_slice %35 {offsets = [0, 0], sizes = [2, 32], strides = [1, 1]} : vector<2x128xf32> to vector<2x32xf32>
    %38 = vector.extract_strided_slice %36 {offsets = [0, 64], sizes = [2, 32], strides = [1, 1]} : vector<2x128xf32> to vector<2x32xf32>
    %39 = vector.extract_strided_slice %35 {offsets = [0, 96], sizes = [2, 32], strides = [1, 1]} : vector<2x128xf32> to vector<2x32xf32>
    %40 = arith.mulf %37, %38 : vector<2x32xf32>
    %41 = math.tanh %40 : vector<2x32xf32>
    %42 = arith.mulf %39, %41 : vector<2x32xf32>
    %43 = arith.truncf %27 : vector<2x32xf32> to vector<2x32xbf16>
    %cst_16 = arith.constant dense<0.000000e+00> : vector<2x128xf32>
    %44 = tpu.matmul %43, %8, %cst_16 {dimension_numbers = #tpu.dot_dimension_numbers<[1], [0], [0], [1], [0, 0, 1, 1], [], []>} : vector<2x32xbf16>, vector<32x128xbf16>, vector<2x128xf32> -> vector<2x128xf32>
    %45 = vector.extract_strided_slice %7 {offsets = [1, 0, 0], sizes = [1, 2, 128], strides = [1, 1, 1]} : vector<8x2x128xf32> to vector<1x2x128xf32>
    %46 = vector.shape_cast %45 : vector<1x2x128xf32> to vector<2x128xf32>
    %47 = arith.addf %44, %46 : vector<2x128xf32>
    %48 = arith.negf %47 : vector<2x128xf32>
    %49 = math.exp %48 : vector<2x128xf32>
    %cst_17 = arith.constant 1.000000e+00 : f32
    %50 = vector.broadcast %cst_17 : f32 to vector<2x128xf32>
    %51 = arith.addf %50, %49 : vector<2x128xf32>
    %52 = arith.divf %50, %51 : vector<2x128xf32>
    %53 = math.tanh %47 : vector<2x128xf32>
    %54 = vector.extract_strided_slice %52 {offsets = [0, 0], sizes = [2, 32], strides = [1, 1]} : vector<2x128xf32> to vector<2x32xf32>
    %55 = vector.extract_strided_slice %52 {offsets = [0, 32], sizes = [2, 32], strides = [1, 1]} : vector<2x128xf32> to vector<2x32xf32>
    %56 = vector.extract_strided_slice %53 {offsets = [0, 64], sizes = [2, 32], strides = [1, 1]} : vector<2x128xf32> to vector<2x32xf32>
    %57 = vector.extract_strided_slice %52 {offsets = [0, 96], sizes = [2, 32], strides = [1, 1]} : vector<2x128xf32> to vector<2x32xf32>
    %58 = arith.mulf %55, %25 : vector<2x32xf32>
    %59 = arith.mulf %54, %56 : vector<2x32xf32>
    %60 = arith.addf %58, %59 : vector<2x32xf32>
    %61 = math.tanh %60 : vector<2x32xf32>
    %62 = arith.mulf %57, %61 : vector<2x32xf32>
    %63 = arith.truncf %62 : vector<2x32xf32> to vector<2x32xbf16>
    %cst_18 = arith.constant dense<0.000000e+00> : vector<2x128xf32>
    %64 = tpu.matmul %63, %9, %cst_18 {dimension_numbers = #tpu.dot_dimension_numbers<[1], [0], [0], [1], [0, 0, 1, 1], [], []>} : vector<2x32xbf16>, vector<32x128xbf16>, vector<2x128xf32> -> vector<2x128xf32>
    %65 = arith.truncf %42 : vector<2x32xf32> to vector<2x32xbf16>
    %cst_19 = arith.constant dense<0.000000e+00> : vector<2x128xf32>
    %66 = tpu.matmul %65, %10, %cst_19 {dimension_numbers = #tpu.dot_dimension_numbers<[1], [0], [0], [1], [0, 0, 1, 1], [], []>} : vector<2x32xbf16>, vector<32x128xbf16>, vector<2x128xf32> -> vector<2x128xf32>
    %67 = arith.addf %64, %66 : vector<2x128xf32>
    %68 = arith.addf %67, %13 : vector<2x128xf32>
    %69 = arith.negf %68 : vector<2x128xf32>
    %70 = math.exp %69 : vector<2x128xf32>
    %cst_20 = arith.constant 1.000000e+00 : f32
    %71 = vector.broadcast %cst_20 : f32 to vector<2x128xf32>
    %72 = arith.addf %71, %70 : vector<2x128xf32>
    %73 = arith.divf %71, %72 : vector<2x128xf32>
    %74 = math.tanh %68 : vector<2x128xf32>
    %75 = vector.extract_strided_slice %73 {offsets = [0, 0], sizes = [2, 32], strides = [1, 1]} : vector<2x128xf32> to vector<2x32xf32>
    %76 = vector.extract_strided_slice %73 {offsets = [0, 32], sizes = [2, 32], strides = [1, 1]} : vector<2x128xf32> to vector<2x32xf32>
    %77 = vector.extract_strided_slice %74 {offsets = [0, 64], sizes = [2, 32], strides = [1, 1]} : vector<2x128xf32> to vector<2x32xf32>
    %78 = vector.extract_strided_slice %73 {offsets = [0, 96], sizes = [2, 32], strides = [1, 1]} : vector<2x128xf32> to vector<2x32xf32>
    %79 = arith.mulf %76, %40 : vector<2x32xf32>
    %80 = arith.mulf %75, %77 : vector<2x32xf32>
    %81 = arith.addf %79, %80 : vector<2x32xf32>
    %82 = math.tanh %81 : vector<2x32xf32>
    %83 = arith.mulf %78, %82 : vector<2x32xf32>
    %84 = arith.truncf %62 : vector<2x32xf32> to vector<2x32xbf16>
    %cst_21 = arith.constant dense<0.000000e+00> : vector<2x128xf32>
    %85 = tpu.matmul %84, %8, %cst_21 {dimension_numbers = #tpu.dot_dimension_numbers<[1], [0], [0], [1], [0, 0, 1, 1], [], []>} : vector<2x32xbf16>, vector<32x128xbf16>, vector<2x128xf32> -> vector<2x128xf32>
    %86 = vector.extract_strided_slice %7 {offsets = [2, 0, 0], sizes = [1, 2, 128], strides = [1, 1, 1]} : vector<8x2x128xf32> to vector<1x2x128xf32>
    %87 = vector.shape_cast %86 : vector<1x2x128xf32> to vector<2x128xf32>
    %88 = arith.addf %85, %87 : vector<2x128xf32>
    %89 = arith.negf %88 : vector<2x128xf32>
    %90 = math.exp %89 : vector<2x128xf32>
    %cst_22 = arith.constant 1.000000e+00 : f32
    %91 = vector.broadcast %cst_22 : f32 to vector<2x128xf32>
    %92 = arith.addf %91, %90 : vector<2x128xf32>
    %93 = arith.divf %91, %92 : vector<2x128xf32>
    %94 = math.tanh %88 : vector<2x128xf32>
    %95 = vector.extract_strided_slice %93 {offsets = [0, 0], sizes = [2, 32], strides = [1, 1]} : vector<2x128xf32> to vector<2x32xf32>
    %96 = vector.extract_strided_slice %93 {offsets = [0, 32], sizes = [2, 32], strides = [1, 1]} : vector<2x128xf32> to vector<2x32xf32>
    %97 = vector.extract_strided_slice %94 {offsets = [0, 64], sizes = [2, 32], strides = [1, 1]} : vector<2x128xf32> to vector<2x32xf32>
    %98 = vector.extract_strided_slice %93 {offsets = [0, 96], sizes = [2, 32], strides = [1, 1]} : vector<2x128xf32> to vector<2x32xf32>
    %99 = arith.mulf %96, %60 : vector<2x32xf32>
    %100 = arith.mulf %95, %97 : vector<2x32xf32>
    %101 = arith.addf %99, %100 : vector<2x32xf32>
    %102 = math.tanh %101 : vector<2x32xf32>
    %103 = arith.mulf %98, %102 : vector<2x32xf32>
    %104 = arith.truncf %103 : vector<2x32xf32> to vector<2x32xbf16>
    %cst_23 = arith.constant dense<0.000000e+00> : vector<2x128xf32>
    %105 = tpu.matmul %104, %9, %cst_23 {dimension_numbers = #tpu.dot_dimension_numbers<[1], [0], [0], [1], [0, 0, 1, 1], [], []>} : vector<2x32xbf16>, vector<32x128xbf16>, vector<2x128xf32> -> vector<2x128xf32>
    %106 = arith.truncf %83 : vector<2x32xf32> to vector<2x32xbf16>
    %cst_24 = arith.constant dense<0.000000e+00> : vector<2x128xf32>
    %107 = tpu.matmul %106, %10, %cst_24 {dimension_numbers = #tpu.dot_dimension_numbers<[1], [0], [0], [1], [0, 0, 1, 1], [], []>} : vector<2x32xbf16>, vector<32x128xbf16>, vector<2x128xf32> -> vector<2x128xf32>
    %108 = arith.addf %105, %107 : vector<2x128xf32>
    %109 = arith.addf %108, %13 : vector<2x128xf32>
    %110 = arith.negf %109 : vector<2x128xf32>
    %111 = math.exp %110 : vector<2x128xf32>
    %cst_25 = arith.constant 1.000000e+00 : f32
    %112 = vector.broadcast %cst_25 : f32 to vector<2x128xf32>
    %113 = arith.addf %112, %111 : vector<2x128xf32>
    %114 = arith.divf %112, %113 : vector<2x128xf32>
    %115 = math.tanh %109 : vector<2x128xf32>
    %116 = vector.extract_strided_slice %114 {offsets = [0, 0], sizes = [2, 32], strides = [1, 1]} : vector<2x128xf32> to vector<2x32xf32>
    %117 = vector.extract_strided_slice %114 {offsets = [0, 32], sizes = [2, 32], strides = [1, 1]} : vector<2x128xf32> to vector<2x32xf32>
    %118 = vector.extract_strided_slice %115 {offsets = [0, 64], sizes = [2, 32], strides = [1, 1]} : vector<2x128xf32> to vector<2x32xf32>
    %119 = vector.extract_strided_slice %114 {offsets = [0, 96], sizes = [2, 32], strides = [1, 1]} : vector<2x128xf32> to vector<2x32xf32>
    %120 = arith.mulf %117, %81 : vector<2x32xf32>
    %121 = arith.mulf %116, %118 : vector<2x32xf32>
    %122 = arith.addf %120, %121 : vector<2x32xf32>
    %123 = math.tanh %122 : vector<2x32xf32>
    %124 = arith.mulf %119, %123 : vector<2x32xf32>
    %125 = arith.truncf %103 : vector<2x32xf32> to vector<2x32xbf16>
    %cst_26 = arith.constant dense<0.000000e+00> : vector<2x128xf32>
    %126 = tpu.matmul %125, %8, %cst_26 {dimension_numbers = #tpu.dot_dimension_numbers<[1], [0], [0], [1], [0, 0, 1, 1], [], []>} : vector<2x32xbf16>, vector<32x128xbf16>, vector<2x128xf32> -> vector<2x128xf32>
    %127 = vector.extract_strided_slice %7 {offsets = [3, 0, 0], sizes = [1, 2, 128], strides = [1, 1, 1]} : vector<8x2x128xf32> to vector<1x2x128xf32>
    %128 = vector.shape_cast %127 : vector<1x2x128xf32> to vector<2x128xf32>
    %129 = arith.addf %126, %128 : vector<2x128xf32>
    %130 = arith.negf %129 : vector<2x128xf32>
    %131 = math.exp %130 : vector<2x128xf32>
    %cst_27 = arith.constant 1.000000e+00 : f32
    %132 = vector.broadcast %cst_27 : f32 to vector<2x128xf32>
    %133 = arith.addf %132, %131 : vector<2x128xf32>
    %134 = arith.divf %132, %133 : vector<2x128xf32>
    %135 = math.tanh %129 : vector<2x128xf32>
    %136 = vector.extract_strided_slice %134 {offsets = [0, 0], sizes = [2, 32], strides = [1, 1]} : vector<2x128xf32> to vector<2x32xf32>
    %137 = vector.extract_strided_slice %134 {offsets = [0, 32], sizes = [2, 32], strides = [1, 1]} : vector<2x128xf32> to vector<2x32xf32>
    %138 = vector.extract_strided_slice %135 {offsets = [0, 64], sizes = [2, 32], strides = [1, 1]} : vector<2x128xf32> to vector<2x32xf32>
    %139 = vector.extract_strided_slice %134 {offsets = [0, 96], sizes = [2, 32], strides = [1, 1]} : vector<2x128xf32> to vector<2x32xf32>
    %140 = arith.mulf %137, %101 : vector<2x32xf32>
    %141 = arith.mulf %136, %138 : vector<2x32xf32>
    %142 = arith.addf %140, %141 : vector<2x32xf32>
    %143 = math.tanh %142 : vector<2x32xf32>
    %144 = arith.mulf %139, %143 : vector<2x32xf32>
    %145 = arith.truncf %144 : vector<2x32xf32> to vector<2x32xbf16>
    %cst_28 = arith.constant dense<0.000000e+00> : vector<2x128xf32>
    %146 = tpu.matmul %145, %9, %cst_28 {dimension_numbers = #tpu.dot_dimension_numbers<[1], [0], [0], [1], [0, 0, 1, 1], [], []>} : vector<2x32xbf16>, vector<32x128xbf16>, vector<2x128xf32> -> vector<2x128xf32>
    %147 = arith.truncf %124 : vector<2x32xf32> to vector<2x32xbf16>
    %cst_29 = arith.constant dense<0.000000e+00> : vector<2x128xf32>
    %148 = tpu.matmul %147, %10, %cst_29 {dimension_numbers = #tpu.dot_dimension_numbers<[1], [0], [0], [1], [0, 0, 1, 1], [], []>} : vector<2x32xbf16>, vector<32x128xbf16>, vector<2x128xf32> -> vector<2x128xf32>
    %149 = arith.addf %146, %148 : vector<2x128xf32>
    %150 = arith.addf %149, %13 : vector<2x128xf32>
    %151 = arith.negf %150 : vector<2x128xf32>
    %152 = math.exp %151 : vector<2x128xf32>
    %cst_30 = arith.constant 1.000000e+00 : f32
    %153 = vector.broadcast %cst_30 : f32 to vector<2x128xf32>
    %154 = arith.addf %153, %152 : vector<2x128xf32>
    %155 = arith.divf %153, %154 : vector<2x128xf32>
    %156 = math.tanh %150 : vector<2x128xf32>
    %157 = vector.extract_strided_slice %155 {offsets = [0, 0], sizes = [2, 32], strides = [1, 1]} : vector<2x128xf32> to vector<2x32xf32>
    %158 = vector.extract_strided_slice %155 {offsets = [0, 32], sizes = [2, 32], strides = [1, 1]} : vector<2x128xf32> to vector<2x32xf32>
    %159 = vector.extract_strided_slice %156 {offsets = [0, 64], sizes = [2, 32], strides = [1, 1]} : vector<2x128xf32> to vector<2x32xf32>
    %160 = vector.extract_strided_slice %155 {offsets = [0, 96], sizes = [2, 32], strides = [1, 1]} : vector<2x128xf32> to vector<2x32xf32>
    %161 = arith.mulf %158, %122 : vector<2x32xf32>
    %162 = arith.mulf %157, %159 : vector<2x32xf32>
    %163 = arith.addf %161, %162 : vector<2x32xf32>
    %164 = math.tanh %163 : vector<2x32xf32>
    %165 = arith.mulf %160, %164 : vector<2x32xf32>
    %166 = arith.truncf %144 : vector<2x32xf32> to vector<2x32xbf16>
    %cst_31 = arith.constant dense<0.000000e+00> : vector<2x128xf32>
    %167 = tpu.matmul %166, %8, %cst_31 {dimension_numbers = #tpu.dot_dimension_numbers<[1], [0], [0], [1], [0, 0, 1, 1], [], []>} : vector<2x32xbf16>, vector<32x128xbf16>, vector<2x128xf32> -> vector<2x128xf32>
    %168 = vector.extract_strided_slice %7 {offsets = [4, 0, 0], sizes = [1, 2, 128], strides = [1, 1, 1]} : vector<8x2x128xf32> to vector<1x2x128xf32>
    %169 = vector.shape_cast %168 : vector<1x2x128xf32> to vector<2x128xf32>
    %170 = arith.addf %167, %169 : vector<2x128xf32>
    %171 = arith.negf %170 : vector<2x128xf32>
    %172 = math.exp %171 : vector<2x128xf32>
    %cst_32 = arith.constant 1.000000e+00 : f32
    %173 = vector.broadcast %cst_32 : f32 to vector<2x128xf32>
    %174 = arith.addf %173, %172 : vector<2x128xf32>
    %175 = arith.divf %173, %174 : vector<2x128xf32>
    %176 = math.tanh %170 : vector<2x128xf32>
    %177 = vector.extract_strided_slice %175 {offsets = [0, 0], sizes = [2, 32], strides = [1, 1]} : vector<2x128xf32> to vector<2x32xf32>
    %178 = vector.extract_strided_slice %175 {offsets = [0, 32], sizes = [2, 32], strides = [1, 1]} : vector<2x128xf32> to vector<2x32xf32>
    %179 = vector.extract_strided_slice %176 {offsets = [0, 64], sizes = [2, 32], strides = [1, 1]} : vector<2x128xf32> to vector<2x32xf32>
    %180 = vector.extract_strided_slice %175 {offsets = [0, 96], sizes = [2, 32], strides = [1, 1]} : vector<2x128xf32> to vector<2x32xf32>
    %181 = arith.mulf %178, %142 : vector<2x32xf32>
    %182 = arith.mulf %177, %179 : vector<2x32xf32>
    %183 = arith.addf %181, %182 : vector<2x32xf32>
    %184 = math.tanh %183 : vector<2x32xf32>
    %185 = arith.mulf %180, %184 : vector<2x32xf32>
    %186 = arith.truncf %185 : vector<2x32xf32> to vector<2x32xbf16>
    %cst_33 = arith.constant dense<0.000000e+00> : vector<2x128xf32>
    %187 = tpu.matmul %186, %9, %cst_33 {dimension_numbers = #tpu.dot_dimension_numbers<[1], [0], [0], [1], [0, 0, 1, 1], [], []>} : vector<2x32xbf16>, vector<32x128xbf16>, vector<2x128xf32> -> vector<2x128xf32>
    %188 = arith.truncf %165 : vector<2x32xf32> to vector<2x32xbf16>
    %cst_34 = arith.constant dense<0.000000e+00> : vector<2x128xf32>
    %189 = tpu.matmul %188, %10, %cst_34 {dimension_numbers = #tpu.dot_dimension_numbers<[1], [0], [0], [1], [0, 0, 1, 1], [], []>} : vector<2x32xbf16>, vector<32x128xbf16>, vector<2x128xf32> -> vector<2x128xf32>
    %190 = arith.addf %187, %189 : vector<2x128xf32>
    %191 = arith.addf %190, %13 : vector<2x128xf32>
    %192 = arith.negf %191 : vector<2x128xf32>
    %193 = math.exp %192 : vector<2x128xf32>
    %cst_35 = arith.constant 1.000000e+00 : f32
    %194 = vector.broadcast %cst_35 : f32 to vector<2x128xf32>
    %195 = arith.addf %194, %193 : vector<2x128xf32>
    %196 = arith.divf %194, %195 : vector<2x128xf32>
    %197 = math.tanh %191 : vector<2x128xf32>
    %198 = vector.extract_strided_slice %196 {offsets = [0, 0], sizes = [2, 32], strides = [1, 1]} : vector<2x128xf32> to vector<2x32xf32>
    %199 = vector.extract_strided_slice %196 {offsets = [0, 32], sizes = [2, 32], strides = [1, 1]} : vector<2x128xf32> to vector<2x32xf32>
    %200 = vector.extract_strided_slice %197 {offsets = [0, 64], sizes = [2, 32], strides = [1, 1]} : vector<2x128xf32> to vector<2x32xf32>
    %201 = vector.extract_strided_slice %196 {offsets = [0, 96], sizes = [2, 32], strides = [1, 1]} : vector<2x128xf32> to vector<2x32xf32>
    %202 = arith.mulf %199, %163 : vector<2x32xf32>
    %203 = arith.mulf %198, %200 : vector<2x32xf32>
    %204 = arith.addf %202, %203 : vector<2x32xf32>
    %205 = math.tanh %204 : vector<2x32xf32>
    %206 = arith.mulf %201, %205 : vector<2x32xf32>
    %207 = arith.truncf %185 : vector<2x32xf32> to vector<2x32xbf16>
    %cst_36 = arith.constant dense<0.000000e+00> : vector<2x128xf32>
    %208 = tpu.matmul %207, %8, %cst_36 {dimension_numbers = #tpu.dot_dimension_numbers<[1], [0], [0], [1], [0, 0, 1, 1], [], []>} : vector<2x32xbf16>, vector<32x128xbf16>, vector<2x128xf32> -> vector<2x128xf32>
    %209 = vector.extract_strided_slice %7 {offsets = [5, 0, 0], sizes = [1, 2, 128], strides = [1, 1, 1]} : vector<8x2x128xf32> to vector<1x2x128xf32>
    %210 = vector.shape_cast %209 : vector<1x2x128xf32> to vector<2x128xf32>
    %211 = arith.addf %208, %210 : vector<2x128xf32>
    %212 = arith.negf %211 : vector<2x128xf32>
    %213 = math.exp %212 : vector<2x128xf32>
    %cst_37 = arith.constant 1.000000e+00 : f32
    %214 = vector.broadcast %cst_37 : f32 to vector<2x128xf32>
    %215 = arith.addf %214, %213 : vector<2x128xf32>
    %216 = arith.divf %214, %215 : vector<2x128xf32>
    %217 = math.tanh %211 : vector<2x128xf32>
    %218 = vector.extract_strided_slice %216 {offsets = [0, 0], sizes = [2, 32], strides = [1, 1]} : vector<2x128xf32> to vector<2x32xf32>
    %219 = vector.extract_strided_slice %216 {offsets = [0, 32], sizes = [2, 32], strides = [1, 1]} : vector<2x128xf32> to vector<2x32xf32>
    %220 = vector.extract_strided_slice %217 {offsets = [0, 64], sizes = [2, 32], strides = [1, 1]} : vector<2x128xf32> to vector<2x32xf32>
    %221 = vector.extract_strided_slice %216 {offsets = [0, 96], sizes = [2, 32], strides = [1, 1]} : vector<2x128xf32> to vector<2x32xf32>
    %222 = arith.mulf %219, %183 : vector<2x32xf32>
    %223 = arith.mulf %218, %220 : vector<2x32xf32>
    %224 = arith.addf %222, %223 : vector<2x32xf32>
    %225 = math.tanh %224 : vector<2x32xf32>
    %226 = arith.mulf %221, %225 : vector<2x32xf32>
    %227 = arith.truncf %226 : vector<2x32xf32> to vector<2x32xbf16>
    %cst_38 = arith.constant dense<0.000000e+00> : vector<2x128xf32>
    %228 = tpu.matmul %227, %9, %cst_38 {dimension_numbers = #tpu.dot_dimension_numbers<[1], [0], [0], [1], [0, 0, 1, 1], [], []>} : vector<2x32xbf16>, vector<32x128xbf16>, vector<2x128xf32> -> vector<2x128xf32>
    %229 = arith.truncf %206 : vector<2x32xf32> to vector<2x32xbf16>
    %cst_39 = arith.constant dense<0.000000e+00> : vector<2x128xf32>
    %230 = tpu.matmul %229, %10, %cst_39 {dimension_numbers = #tpu.dot_dimension_numbers<[1], [0], [0], [1], [0, 0, 1, 1], [], []>} : vector<2x32xbf16>, vector<32x128xbf16>, vector<2x128xf32> -> vector<2x128xf32>
    %231 = arith.addf %228, %230 : vector<2x128xf32>
    %232 = arith.addf %231, %13 : vector<2x128xf32>
    %233 = arith.negf %232 : vector<2x128xf32>
    %234 = math.exp %233 : vector<2x128xf32>
    %cst_40 = arith.constant 1.000000e+00 : f32
    %235 = vector.broadcast %cst_40 : f32 to vector<2x128xf32>
    %236 = arith.addf %235, %234 : vector<2x128xf32>
    %237 = arith.divf %235, %236 : vector<2x128xf32>
    %238 = math.tanh %232 : vector<2x128xf32>
    %239 = vector.extract_strided_slice %237 {offsets = [0, 0], sizes = [2, 32], strides = [1, 1]} : vector<2x128xf32> to vector<2x32xf32>
    %240 = vector.extract_strided_slice %237 {offsets = [0, 32], sizes = [2, 32], strides = [1, 1]} : vector<2x128xf32> to vector<2x32xf32>
    %241 = vector.extract_strided_slice %238 {offsets = [0, 64], sizes = [2, 32], strides = [1, 1]} : vector<2x128xf32> to vector<2x32xf32>
    %242 = vector.extract_strided_slice %237 {offsets = [0, 96], sizes = [2, 32], strides = [1, 1]} : vector<2x128xf32> to vector<2x32xf32>
    %243 = arith.mulf %240, %204 : vector<2x32xf32>
    %244 = arith.mulf %239, %241 : vector<2x32xf32>
    %245 = arith.addf %243, %244 : vector<2x32xf32>
    %246 = math.tanh %245 : vector<2x32xf32>
    %247 = arith.mulf %242, %246 : vector<2x32xf32>
    %248 = arith.truncf %226 : vector<2x32xf32> to vector<2x32xbf16>
    %cst_41 = arith.constant dense<0.000000e+00> : vector<2x128xf32>
    %249 = tpu.matmul %248, %8, %cst_41 {dimension_numbers = #tpu.dot_dimension_numbers<[1], [0], [0], [1], [0, 0, 1, 1], [], []>} : vector<2x32xbf16>, vector<32x128xbf16>, vector<2x128xf32> -> vector<2x128xf32>
    %250 = vector.extract_strided_slice %7 {offsets = [6, 0, 0], sizes = [1, 2, 128], strides = [1, 1, 1]} : vector<8x2x128xf32> to vector<1x2x128xf32>
    %251 = vector.shape_cast %250 : vector<1x2x128xf32> to vector<2x128xf32>
    %252 = arith.addf %249, %251 : vector<2x128xf32>
    %253 = arith.negf %252 : vector<2x128xf32>
    %254 = math.exp %253 : vector<2x128xf32>
    %cst_42 = arith.constant 1.000000e+00 : f32
    %255 = vector.broadcast %cst_42 : f32 to vector<2x128xf32>
    %256 = arith.addf %255, %254 : vector<2x128xf32>
    %257 = arith.divf %255, %256 : vector<2x128xf32>
    %258 = math.tanh %252 : vector<2x128xf32>
    %259 = vector.extract_strided_slice %257 {offsets = [0, 0], sizes = [2, 32], strides = [1, 1]} : vector<2x128xf32> to vector<2x32xf32>
    %260 = vector.extract_strided_slice %257 {offsets = [0, 32], sizes = [2, 32], strides = [1, 1]} : vector<2x128xf32> to vector<2x32xf32>
    %261 = vector.extract_strided_slice %258 {offsets = [0, 64], sizes = [2, 32], strides = [1, 1]} : vector<2x128xf32> to vector<2x32xf32>
    %262 = vector.extract_strided_slice %257 {offsets = [0, 96], sizes = [2, 32], strides = [1, 1]} : vector<2x128xf32> to vector<2x32xf32>
    %263 = arith.mulf %260, %224 : vector<2x32xf32>
    %264 = arith.mulf %259, %261 : vector<2x32xf32>
    %265 = arith.addf %263, %264 : vector<2x32xf32>
    %266 = math.tanh %265 : vector<2x32xf32>
    %267 = arith.mulf %262, %266 : vector<2x32xf32>
    %268 = arith.truncf %267 : vector<2x32xf32> to vector<2x32xbf16>
    %cst_43 = arith.constant dense<0.000000e+00> : vector<2x128xf32>
    %269 = tpu.matmul %268, %9, %cst_43 {dimension_numbers = #tpu.dot_dimension_numbers<[1], [0], [0], [1], [0, 0, 1, 1], [], []>} : vector<2x32xbf16>, vector<32x128xbf16>, vector<2x128xf32> -> vector<2x128xf32>
    %270 = arith.truncf %247 : vector<2x32xf32> to vector<2x32xbf16>
    %cst_44 = arith.constant dense<0.000000e+00> : vector<2x128xf32>
    %271 = tpu.matmul %270, %10, %cst_44 {dimension_numbers = #tpu.dot_dimension_numbers<[1], [0], [0], [1], [0, 0, 1, 1], [], []>} : vector<2x32xbf16>, vector<32x128xbf16>, vector<2x128xf32> -> vector<2x128xf32>
    %272 = arith.addf %269, %271 : vector<2x128xf32>
    %273 = arith.addf %272, %13 : vector<2x128xf32>
    %274 = arith.negf %273 : vector<2x128xf32>
    %275 = math.exp %274 : vector<2x128xf32>
    %cst_45 = arith.constant 1.000000e+00 : f32
    %276 = vector.broadcast %cst_45 : f32 to vector<2x128xf32>
    %277 = arith.addf %276, %275 : vector<2x128xf32>
    %278 = arith.divf %276, %277 : vector<2x128xf32>
    %279 = math.tanh %273 : vector<2x128xf32>
    %280 = vector.extract_strided_slice %278 {offsets = [0, 0], sizes = [2, 32], strides = [1, 1]} : vector<2x128xf32> to vector<2x32xf32>
    %281 = vector.extract_strided_slice %278 {offsets = [0, 32], sizes = [2, 32], strides = [1, 1]} : vector<2x128xf32> to vector<2x32xf32>
    %282 = vector.extract_strided_slice %279 {offsets = [0, 64], sizes = [2, 32], strides = [1, 1]} : vector<2x128xf32> to vector<2x32xf32>
    %283 = vector.extract_strided_slice %278 {offsets = [0, 96], sizes = [2, 32], strides = [1, 1]} : vector<2x128xf32> to vector<2x32xf32>
    %284 = arith.mulf %281, %245 : vector<2x32xf32>
    %285 = arith.mulf %280, %282 : vector<2x32xf32>
    %286 = arith.addf %284, %285 : vector<2x32xf32>
    %287 = math.tanh %286 : vector<2x32xf32>
    %288 = arith.mulf %283, %287 : vector<2x32xf32>
    %289 = arith.truncf %267 : vector<2x32xf32> to vector<2x32xbf16>
    %cst_46 = arith.constant dense<0.000000e+00> : vector<2x128xf32>
    %290 = tpu.matmul %289, %8, %cst_46 {dimension_numbers = #tpu.dot_dimension_numbers<[1], [0], [0], [1], [0, 0, 1, 1], [], []>} : vector<2x32xbf16>, vector<32x128xbf16>, vector<2x128xf32> -> vector<2x128xf32>
    %291 = vector.extract_strided_slice %7 {offsets = [7, 0, 0], sizes = [1, 2, 128], strides = [1, 1, 1]} : vector<8x2x128xf32> to vector<1x2x128xf32>
    %292 = vector.shape_cast %291 : vector<1x2x128xf32> to vector<2x128xf32>
    %293 = arith.addf %290, %292 : vector<2x128xf32>
    %294 = arith.negf %293 : vector<2x128xf32>
    %295 = math.exp %294 : vector<2x128xf32>
    %cst_47 = arith.constant 1.000000e+00 : f32
    %296 = vector.broadcast %cst_47 : f32 to vector<2x128xf32>
    %297 = arith.addf %296, %295 : vector<2x128xf32>
    %298 = arith.divf %296, %297 : vector<2x128xf32>
    %299 = math.tanh %293 : vector<2x128xf32>
    %300 = vector.extract_strided_slice %298 {offsets = [0, 0], sizes = [2, 32], strides = [1, 1]} : vector<2x128xf32> to vector<2x32xf32>
    %301 = vector.extract_strided_slice %298 {offsets = [0, 32], sizes = [2, 32], strides = [1, 1]} : vector<2x128xf32> to vector<2x32xf32>
    %302 = vector.extract_strided_slice %299 {offsets = [0, 64], sizes = [2, 32], strides = [1, 1]} : vector<2x128xf32> to vector<2x32xf32>
    %303 = vector.extract_strided_slice %298 {offsets = [0, 96], sizes = [2, 32], strides = [1, 1]} : vector<2x128xf32> to vector<2x32xf32>
    %304 = arith.mulf %301, %265 : vector<2x32xf32>
    %305 = arith.mulf %300, %302 : vector<2x32xf32>
    %306 = arith.addf %304, %305 : vector<2x32xf32>
    %307 = math.tanh %306 : vector<2x32xf32>
    %308 = arith.mulf %303, %307 : vector<2x32xf32>
    %309 = arith.truncf %308 : vector<2x32xf32> to vector<2x32xbf16>
    %cst_48 = arith.constant dense<0.000000e+00> : vector<2x128xf32>
    %310 = tpu.matmul %309, %9, %cst_48 {dimension_numbers = #tpu.dot_dimension_numbers<[1], [0], [0], [1], [0, 0, 1, 1], [], []>} : vector<2x32xbf16>, vector<32x128xbf16>, vector<2x128xf32> -> vector<2x128xf32>
    %311 = arith.truncf %288 : vector<2x32xf32> to vector<2x32xbf16>
    %cst_49 = arith.constant dense<0.000000e+00> : vector<2x128xf32>
    %312 = tpu.matmul %311, %10, %cst_49 {dimension_numbers = #tpu.dot_dimension_numbers<[1], [0], [0], [1], [0, 0, 1, 1], [], []>} : vector<2x32xbf16>, vector<32x128xbf16>, vector<2x128xf32> -> vector<2x128xf32>
    %313 = arith.addf %310, %312 : vector<2x128xf32>
    %314 = arith.addf %313, %13 : vector<2x128xf32>
    %315 = arith.negf %314 : vector<2x128xf32>
    %316 = math.exp %315 : vector<2x128xf32>
    %cst_50 = arith.constant 1.000000e+00 : f32
    %317 = vector.broadcast %cst_50 : f32 to vector<2x128xf32>
    %318 = arith.addf %317, %316 : vector<2x128xf32>
    %319 = arith.divf %317, %318 : vector<2x128xf32>
    %320 = math.tanh %314 : vector<2x128xf32>
    %321 = vector.extract_strided_slice %319 {offsets = [0, 0], sizes = [2, 32], strides = [1, 1]} : vector<2x128xf32> to vector<2x32xf32>
    %322 = vector.extract_strided_slice %319 {offsets = [0, 32], sizes = [2, 32], strides = [1, 1]} : vector<2x128xf32> to vector<2x32xf32>
    %323 = vector.extract_strided_slice %320 {offsets = [0, 64], sizes = [2, 32], strides = [1, 1]} : vector<2x128xf32> to vector<2x32xf32>
    %324 = vector.extract_strided_slice %319 {offsets = [0, 96], sizes = [2, 32], strides = [1, 1]} : vector<2x128xf32> to vector<2x32xf32>
    %325 = arith.mulf %322, %286 : vector<2x32xf32>
    %326 = arith.mulf %321, %323 : vector<2x32xf32>
    %327 = arith.addf %325, %326 : vector<2x32xf32>
    %328 = math.tanh %327 : vector<2x32xf32>
    %329 = arith.mulf %324, %328 : vector<2x32xf32>
    %330 = arith.truncf %329 : vector<2x32xf32> to vector<2x32xbf16>
    %c0_51 = arith.constant 0 : index
    %c0_52 = arith.constant 0 : index
    %331 = vector.load %arg7[%c0_51, %c0_52] : memref<32x4xbf16, #tpu.memory_space<vmem>>, vector<32x4xbf16>
    %cst_53 = arith.constant dense<0.000000e+00> : vector<2x4xf32>
    %332 = tpu.matmul %330, %331, %cst_53 {dimension_numbers = #tpu.dot_dimension_numbers<[1], [0], [0], [1], [0, 0, 1, 1], [], []>} : vector<2x32xbf16>, vector<32x4xbf16>, vector<2x4xf32> -> vector<2x4xf32>
    %c0_54 = arith.constant 0 : index
    %c0_55 = arith.constant 0 : index
    %333 = vector.load %arg8[%c0_54, %c0_55] : memref<1x4xf32, #tpu.memory_space<vmem>>, vector<1x4xf32>
    %334 = vector.broadcast %333 : vector<1x4xf32> to vector<2x4xf32>
    %335 = arith.addf %332, %334 : vector<2x4xf32>
    %c0_56 = arith.constant 0 : index
    %c0_57 = arith.constant 0 : index
    %336 = vector.load %arg9[%c0_56, %c0_57] : memref<2x4xf32, #tpu.memory_space<vmem>>, vector<2x4xf32>
    tpu.vector_store %arg9[%c0_56, %c0_57], %335 {strides = array<i32>} : memref<2x4xf32, #tpu.memory_space<vmem>>, vector<2x4xf32>,
    return
  }
}

</mosaic_0001>

<llo_original>
// kernel: rnn_forward.1
$region0: #{rnn_forward.1}
  #allocation0 [shape = 'u32[]', space=smem, size = 0x4, offset = 0x4, fixed_abs, tag = 'smem constant byte address 0x4 - core index']
  #allocation1 [shape = 'u32[72,128]{1,0:T(1,128)}', space=vmem, size = 0x9000, scoped, tag = 'internal scratch']
  %s0 = inlined_call_operand.vmem [shape: f32[16,16], index: 0, kind: input, shape index: {}]
  %s1 = inlined_call_operand.vmem [shape: bf16[16,128], index: 1, kind: input, shape index: {}]
  %s2 = inlined_call_operand.vmem [shape: bf16[32,128], index: 2, kind: input, shape index: {}]
  %s3 = inlined_call_operand.hbm [shape: f32[1,128], index: 3, kind: input, shape index: {}]
  %s4 = inlined_call_operand.vmem [shape: bf16[32,128], index: 4, kind: input, shape index: {}]
  %s5 = inlined_call_operand.vmem [shape: bf16[32,128], index: 5, kind: input, shape index: {}]
  %s6 = inlined_call_operand.hbm [shape: f32[1,128], index: 6, kind: input, shape index: {}]
  %s7 = inlined_call_operand.vmem [shape: bf16[32,4], index: 7, kind: input, shape index: {}]
  %s8 = inlined_call_operand.hbm [shape: f32[1,4], index: 8, kind: input, shape index: {}]
  %s9 = inlined_call_operand.hbm [shape: f32[2,4], index: 9, kind: output, shape index: {}]
  %s10 = sld [smem:[#allocation0]]
  $region58: #{rnn_forward.1} parent=0
    _
  %s12 = ssub.s32 1, %s10
  %s13 = scalar_select 0, %s12, %s10
  $region1: #{rnn_forward.1} parent=0
    #allocation2 [shape = 'u8[512]{0}', space=vmem, size = 0x400, scoped, tag = 'input window, operand 3, single buffered']
    #allocation3 [shape = 's32[1]{0}', space=sflag, size = 0x4, scoped, tag = 'scoped memory for rnn_forward.1']
    #allocation4 [shape = 's32[1]{0}', space=sflag, size = 0x4, scoped, tag = 'scoped memory for rnn_forward.1']
    #allocation5 [shape = 'u8[512]{0}', space=vmem, size = 0x400, scoped, tag = 'input window, operand 6, single buffered']
    #allocation6 [shape = 's32[1]{0}', space=sflag, size = 0x4, scoped, tag = 'scoped memory for rnn_forward.1']
    #allocation7 [shape = 'u8[512]{0}', space=vmem, size = 0x400, scoped, tag = 'input window, operand 8, single buffered']
    #allocation8 [shape = 'u8[1024]{0}', space=vmem, size = 0x400, scoped, tag = 'output window, operand 0, single buffered']
    %14 = vsyncpa [#allocation3], 0
    %15 = vsyncpa [#allocation6], 0
    %16 = vsyncpa [#allocation4], 0
    // Predicated region
    $region2: #{rnn_forward.1} parent=1 // pred_check
      _
    $region3: #{rnn_forward.1} parent=1 // pred_check_branch
      %18 = sbr.rel (0) target = $region5
    $region4: #{rnn_forward.1} parent=1 // pred_region
      _
    $region5: #{rnn_forward.1} parent=1 // pred_fallthru
      _
    // Predicated region
    $region6: #{rnn_forward.1} parent=1 // pred_check
      _
    $region7: #{rnn_forward.1} parent=1 // pred_check_branch
      %20 = sbr.rel (0) target = $region9
    $region8: #{rnn_forward.1} parent=1 // pred_region
      _
    $region9: #{rnn_forward.1} parent=1 // pred_fallthru
      _
    // Predicated region
    $region10: #{rnn_forward.1} parent=1 // pred_check
      _
    $region11: #{rnn_forward.1} parent=1 // pred_check_branch
      %22 = sbr.rel (0) target = $region13
    $region12: #{rnn_forward.1} parent=1 // pred_region
      _
    $region13: #{rnn_forward.1} parent=1 // pred_fallthru
      _
    // Predicated region
    $region14: #{rnn_forward.1} parent=1 // pred_check
      _
    $region15: #{rnn_forward.1} parent=1 // pred_check_branch
      %24 = sbr.rel (0) target = $region17
    $region16: #{rnn_forward.1} parent=1 // pred_region
      %26 = vsyncadd [#allocation3], 0
      %s28 = sshll.u32 %s3, 4
      %s29 = int_to_ptr.hbm [resolvable:$true] %s28
      %s30 = sshll.u32 [#allocation2], 4
      %s31 = int_to_ptr.vmem [resolvable:$true] %s30
      %33 = dma.hbm_to_vmem [thread:$0]  %s29, 16, %s31, [#allocation3]
    $region17: #{rnn_forward.1} parent=1 // pred_fallthru
      _
    // Predicated region
    $region18: #{rnn_forward.1} parent=1 // pred_check
      _
    $region19: #{rnn_forward.1} parent=1 // pred_check_branch
      %35 = sbr.rel (0) target = $region21
    $region20: #{rnn_forward.1} parent=1 // pred_region
      _
    $region21: #{rnn_forward.1} parent=1 // pred_fallthru
      _
    // Predicated region
    $region22: #{rnn_forward.1} parent=1 // pred_check
      _
    $region23: #{rnn_forward.1} parent=1 // pred_check_branch
      %37 = sbr.rel (0) target = $region25
    $region24: #{rnn_forward.1} parent=1 // pred_region
      _
    $region25: #{rnn_forward.1} parent=1 // pred_fallthru
      _
    // Predicated region
    $region26: #{rnn_forward.1} parent=1 // pred_check
      _
    $region27: #{rnn_forward.1} parent=1 // pred_check_branch
      %39 = sbr.rel (0) target = $region29
    $region28: #{rnn_forward.1} parent=1 // pred_region
      %41 = vsyncadd [#allocation6], 0
      %s43 = sshll.u32 %s6, 4
      %s44 = int_to_ptr.hbm [resolvable:$true] %s43
      %s45 = sshll.u32 [#allocation5], 4
      %s46 = int_to_ptr.vmem [resolvable:$true] %s45
      %48 = dma.hbm_to_vmem [thread:$0]  %s44, 16, %s46, [#allocation6]
    $region29: #{rnn_forward.1} parent=1 // pred_fallthru
      _
    // Predicated region
    $region30: #{rnn_forward.1} parent=1 // pred_check
      _
    $region31: #{rnn_forward.1} parent=1 // pred_check_branch
      %50 = sbr.rel (0) target = $region33
    $region32: #{rnn_forward.1} parent=1 // pred_region
      _
    $region33: #{rnn_forward.1} parent=1 // pred_fallthru
      _
    // Predicated region
    $region34: #{rnn_forward.1} parent=1 // pred_check
      _
    $region35: #{rnn_forward.1} parent=1 // pred_check_branch
      %52 = sbr.rel (0) target = $region37
    $region36: #{rnn_forward.1} parent=1 // pred_region
      %54 = vsyncadd [#allocation6], 0
      %s56 = sshll.u32 %s8, 4
      %s57 = int_to_ptr.hbm [resolvable:$true] %s56
      %s58 = sshll.u32 [#allocation7], 4
      %s59 = int_to_ptr.vmem [resolvable:$true] %s58
      %61 = dma.hbm_to_vmem [thread:$0]  %s57, 16, %s59, [#allocation6]
    $region37: #{rnn_forward.1} parent=1 // pred_fallthru
      _
    // Predicated region
    $region38: #{rnn_forward.1} parent=1 // pred_check
      _
    $region39: #{rnn_forward.1} parent=1 // pred_check_branch
      %63 = sbr.rel (0) target = $region41
    $region40: #{rnn_forward.1} parent=1 // pred_region
      %65 = dma.done [#allocation3], 16
    $region41: #{rnn_forward.1} parent=1 // pred_fallthru
      _
    // Predicated region
    $region42: #{rnn_forward.1} parent=1 // pred_check
      _
    $region43: #{rnn_forward.1} parent=1 // pred_check_branch
      %67 = sbr.rel (0) target = $region45
    $region44: #{rnn_forward.1} parent=1 // pred_region
      %69 = dma.done [#allocation6], 16
    $region45: #{rnn_forward.1} parent=1 // pred_fallthru
      _
    // Predicated region
    $region46: #{rnn_forward.1} parent=1 // pred_check
      _
    $region47: #{rnn_forward.1} parent=1 // pred_check_branch
      %71 = sbr.rel (0) target = $region49
    $region48: #{rnn_forward.1} parent=1 // pred_region
      %73 = dma.done [#allocation6], 16
    $region49: #{rnn_forward.1} parent=1 // pred_fallthru
      _
    %v75 = vld [vmem:[%s0] sm:$0xff]
    %v76 = vld [vmem:[%s0 + $0x8] sm:$0xff]
    %v77 = vpack.c.bf16 %v76, %v75
    %v78 = vld [vmem:[%s1] sm:$0xf]
    %v79 = vld [vmem:[%s1 + $0x4] sm:$0xf]
    %v80 = vld [vmem:[#allocation2] sm:$0x1]
    %v82 = vperm.slane %v80, 0
    %v86 = vunpack.c.l.b16 %v78
    %v87 = vunpack.c.l.b16 %v79
    %v88 = vpack.c.b16 %v87, %v86
    %vm90 = vcmask 130048
    %v92 = vsel %vm90, %v77, 0
    %94 = vmatpush.bf16.msra.mxu0 0
    %95 = vmatpush.bf16.msra.mxu0 0
    %96 = vmatpush.bf16.msra.mxu0 0
    %97 = vmatpush.bf16.msra.mxu0 0
    %98 = vmatpush.bf16.msra.mxu0 0
    %99 = vmatpush.bf16.msra.mxu0 0
    %100 = vmatpush.bf16.msra.mxu0 0
    %101 = vmatpush.bf16.msra.mxu0 %v88
    %102 = vmatmul.bf16.gmra.mxu0 %v92
    %v103 = vpop.f32.mrf.mxu0
    %v104 = vadd.f32 %v82, %v103
    %v105 = vpop.f32.mrf.mxu0
    %v106 = vadd.f32 %v82, %v105
    %107 = vdwg.mxu0
    %v110 = vrot.slane %v104, 2
    %v111 = vrot.slane %v104, 4
    %v112 = vrot.slane %v104, 6
    %v113 = vrot.slane %v106, 2
    %v114 = vrot.slane %v106, 4
    %v115 = vrot.slane %v106, 6
    %v122 = vld [vmem:[%s2] sm:$0xf]
    %v123 = vld [vmem:[%s2 + $0x4] sm:$0xf]
    %v124 = vld [vmem:[%s2 + $0x8] sm:$0xf]
    %v125 = vld [vmem:[%s2 + $0xc] sm:$0xf]
    %v126 = vld [vmem:[%s4] sm:$0xf]
    %v127 = vld [vmem:[%s4 + $0x4] sm:$0xf]
    %v128 = vld [vmem:[%s4 + $0x8] sm:$0xf]
    %v129 = vld [vmem:[%s4 + $0xc] sm:$0xf]
    %v130 = vld [vmem:[%s5] sm:$0xf]
    %v131 = vld [vmem:[%s5 + $0x4] sm:$0xf]
    %v132 = vld [vmem:[%s5 + $0x8] sm:$0xf]
    %v133 = vld [vmem:[%s5 + $0xc] sm:$0xf]
    %v134 = vld [vmem:[#allocation5] sm:$0x1]
    %v136 = vperm.slane %v134, 0
    %v138 = vxor.u32 %v104, 2147483648
    %v139 = vmul.f32 %v138, 1.442695
    %v140 = vpow.pop %v139
    %v141 = vadd.f32 %v140, 1.0
    %v142 = vrcp.pop %v141
    %v143 = vmul.f32 %v141, %v142
    %v144 = vsub.f32 1.0, %v143
    %v145 = vmul.f32 %v142, %v144
    %v146 = vadd.f32 %v142, %v145
    %vm147 = vweird.f32 %v141
    %vm148 = vweird.f32 %v142
    %vm149 = vmor %vm147, %vm148
    %v150 = vsel %vm149, %v142, %v146
    %v151 = vand.u32 2147483647, %v141
    %vm152 = vcmp.eq.f32.partialorder %v151, 8.507059e+37
    %v153 = vand.u32 %v141, 2147483648
    %v154 = vor.u32 1.1754944e-38, %v153
    %v155 = vsel %vm152, %v154, %v150
    %v156 = vmul.f32 1.0, %v155
    %v157 = vtanh.pop %v104
    %159 = vrot.lane.b32.xlu0 %v157, 64
    %v160 = vpop.permute.xlu0 %159
    %v162 = vmul.f32 %v156, %v160
    %v163 = vtanh.pop %v162
    %165 = vrot.lane.b32.xlu0 %v163, 96
    %v166 = vpop.permute.xlu0 %165
    %v168 = vmul.f32 %v156, %v166
    %v169 = vpack.c.bf16 %v168, %v168
    %171 = vrot.lane.b32.xlu0 %v169, 32
    %v172 = vpop.permute.xlu0 %171
    %v177 = vunpack.c.l.b16 %v126
    %v178 = vunpack.c.l.b16 %v127
    %v179 = vunpack.c.l.b16 %v128
    %v180 = vunpack.c.l.b16 %v129
    %v181 = vpack.c.b16 %v178, %v177
    %v182 = vpack.c.b16 %v180, %v179
    %vm185 = vcmask 261120
    %v187 = vsel %vm185, %v172, 0
    %189 = vmatpush.bf16.msra.mxu0 0
    %190 = vmatpush.bf16.msra.mxu0 0
    %191 = vmatpush.bf16.msra.mxu0 0
    %192 = vmatpush.bf16.msra.mxu0 0
    %193 = vmatpush.bf16.msra.mxu0 0
    %194 = vmatpush.bf16.msra.mxu0 0
    %195 = vmatpush.bf16.msra.mxu0 %v182
    %196 = vmatpush.bf16.msra.mxu0 %v181
    %197 = vmatmul.bf16.gmra.mxu0 %v187
    %v198 = vpop.f32.mrf.mxu0
    %v199 = vadd.f32 %v136, %v198
    %v200 = vpop.f32.mrf.mxu0
    %201 = vdwg.mxu0
    %v202 = vxor.u32 %v199, 2147483648
    %v203 = vmul.f32 %v202, 1.442695
    %v204 = vpow.pop %v203
    %v205 = vadd.f32 %v204, 1.0
    %v206 = vrcp.pop %v205
    %v207 = vmul.f32 %v205, %v206
    %v208 = vsub.f32 1.0, %v207
    %v209 = vmul.f32 %v206, %v208
    %v210 = vadd.f32 %v206, %v209
    %vm211 = vweird.f32 %v205
    %vm212 = vweird.f32 %v206
    %vm213 = vmor %vm211, %vm212
    %v214 = vsel %vm213, %v206, %v210
    %v215 = vand.u32 2147483647, %v205
    %vm216 = vcmp.eq.f32.partialorder %v215, 8.507059e+37
    %v217 = vand.u32 %v205, 2147483648
    %v218 = vor.u32 1.1754944e-38, %v217
    %v219 = vsel %vm216, %v218, %v214
    %v220 = vmul.f32 1.0, %v219
    %v221 = vtanh.pop %v199
    %223 = vrot.lane.b32.xlu0 %v221, 64
    %v224 = vpop.permute.xlu0 %223
    %v226 = vmul.f32 %v220, %v224
    %v227 = vtanh.pop %v226
    %229 = vrot.lane.b32.xlu0 %v227, 96
    %v230 = vpop.permute.xlu0 %229
    %v232 = vmul.f32 %v220, %v230
    %v237 = vunpack.c.l.b16 %v122
    %v238 = vunpack.c.l.b16 %v123
    %v239 = vunpack.c.l.b16 %v124
    %v240 = vunpack.c.l.b16 %v125
    %v241 = vpack.c.b16 %v238, %v237
    %v242 = vpack.c.b16 %v240, %v239
    %245 = vmatpush.bf16.msra.mxu0 0
    %246 = vmatpush.bf16.msra.mxu0 0
    %247 = vmatpush.bf16.msra.mxu0 0
    %248 = vmatpush.bf16.msra.mxu0 0
    %249 = vmatpush.bf16.msra.mxu0 0
    %250 = vmatpush.bf16.msra.mxu0 0
    %251 = vmatpush.bf16.msra.mxu0 %v242
    %252 = vmatpush.bf16.msra.mxu0 %v241
    %253 = vmatmul.bf16.gmra.mxu0 %v187
    %v254 = vpop.f32.mrf.mxu0
    %v255 = vadd.f32 %v110, %v254
    %v256 = vpop.f32.mrf.mxu0
    %257 = vdwg.mxu0
    %v258 = vxor.u32 %v255, 2147483648
    %v259 = vmul.f32 %v258, 1.442695
    %v260 = vpow.pop %v259
    %v261 = vadd.f32 %v260, 1.0
    %v262 = vrcp.pop %v261
    %v263 = vmul.f32 %v261, %v262
    %v264 = vsub.f32 1.0, %v263
    %v265 = vmul.f32 %v262, %v264
    %v266 = vadd.f32 %v262, %v265
    %vm267 = vweird.f32 %v261
    %vm268 = vweird.f32 %v262
    %vm269 = vmor %vm267, %vm268
    %v270 = vsel %vm269, %v262, %v266
    %v271 = vand.u32 2147483647, %v261
    %vm272 = vcmp.eq.f32.partialorder %v271, 8.507059e+37
    %v273 = vand.u32 %v261, 2147483648
    %v274 = vor.u32 1.1754944e-38, %v273
    %v275 = vsel %vm272, %v274, %v270
    %v276 = vmul.f32 1.0, %v275
    %v277 = vtanh.pop %v255
    %279 = vst [vmem:[#allocation1] ss:$4 sm:$0xff] %v162
    %v280 = vld.sshfl [vmem:[#allocation1] sm:$0xff pattern:$0x73625140]
    %281 = vrot.lane.b32.xlu0 %v280, 32
    %v282 = vpop.permute.xlu0 %281
    %v284 = vmul.f32 %v276, %v282
    %286 = vrot.lane.b32.xlu0 %v277, 64
    %v287 = vpop.permute.xlu0 %286
    %v289 = vmul.f32 %v276, %v287
    %291 = vrot.lane.b32.xlu0 %v289, 32
    %v292 = vpop.permute.xlu0 %291
    %v294 = vadd.f32 %v284, %v292
    %v295 = vtanh.pop %v294
    %297 = vrot.lane.b32.xlu0 %v295, 64
    %v298 = vpop.permute.xlu0 %297
    %v300 = vmul.f32 %v276, %v298
    %v301 = vpack.c.bf16 %v300, %v300
    %v302 = vpack.c.bf16 %v232, %v232
    %304 = vrot.lane.b32.xlu0 %v302, 32
    %v305 = vpop.permute.xlu0 %304
    %v310 = vunpack.c.l.b16 %v130
    %v311 = vunpack.c.l.b16 %v131
    %v312 = vunpack.c.l.b16 %v132
    %v313 = vunpack.c.l.b16 %v133
    %v314 = vpack.c.b16 %v311, %v310
    %v315 = vpack.c.b16 %v313, %v312
    %v319 = vsel %vm185, %v305, 0
    %321 = vmatpush.bf16.msra.mxu0 0
    %322 = vmatpush.bf16.msra.mxu0 0
    %323 = vmatpush.bf16.msra.mxu0 0
    %324 = vmatpush.bf16.msra.mxu0 0
    %325 = vmatpush.bf16.msra.mxu0 0
    %326 = vmatpush.bf16.msra.mxu0 0
    %327 = vmatpush.bf16.msra.mxu0 %v315
    %328 = vmatpush.bf16.msra.mxu0 %v314
    %329 = vmatmul.bf16.gmra.mxu0 %v319
    %v330 = vpop.f32.mrf.mxu0
    %v331 = vadd.f32 0.0, %v330
    %v332 = vpop.f32.mrf.mxu0
    %333 = vdwg.mxu0
    %335 = vrot.lane.b32.xlu0 %v301, 32
    %v336 = vpop.permute.xlu0 %335
    %v338 = vsel %vm185, %v336, 0
    %340 = vmatpush.bf16.msra.mxu0 0
    %341 = vmatpush.bf16.msra.mxu0 0
    %342 = vmatpush.bf16.msra.mxu0 0
    %343 = vmatpush.bf16.msra.mxu0 0
    %344 = vmatpush.bf16.msra.mxu0 0
    %345 = vmatpush.bf16.msra.mxu0 0
    %346 = vmatpush.bf16.msra.mxu0 %v182
    %347 = vmatpush.bf16.msra.mxu0 %v181
    %348 = vmatmul.bf16.gmra.mxu0 %v338
    %v349 = vpop.f32.mrf.mxu0
    %v350 = vadd.f32 %v331, %v349
    %v351 = vpop.f32.mrf.mxu0
    %352 = vdwg.mxu0
    %v353 = vadd.f32 %v350, %v136
    %v354 = vxor.u32 %v353, 2147483648
    %v355 = vmul.f32 %v354, 1.442695
    %v356 = vpow.pop %v355
    %v357 = vadd.f32 %v356, 1.0
    %v358 = vrcp.pop %v357
    %v359 = vmul.f32 %v357, %v358
    %v360 = vsub.f32 1.0, %v359
    %v361 = vmul.f32 %v358, %v360
    %v362 = vadd.f32 %v358, %v361
    %vm363 = vweird.f32 %v357
    %vm364 = vweird.f32 %v358
    %vm365 = vmor %vm363, %vm364
    %v366 = vsel %vm365, %v358, %v362
    %v367 = vand.u32 2147483647, %v357
    %vm368 = vcmp.eq.f32.partialorder %v367, 8.507059e+37
    %v369 = vand.u32 %v357, 2147483648
    %v370 = vor.u32 1.1754944e-38, %v369
    %v371 = vsel %vm368, %v370, %v366
    %v372 = vmul.f32 1.0, %v371
    %v373 = vtanh.pop %v353
    %375 = vrot.lane.b32.xlu0 %v226, 32
    %v376 = vpop.permute.xlu0 %375
    %v378 = vmul.f32 %v372, %v376
    %380 = vrot.lane.b32.xlu0 %v373, 64
    %v381 = vpop.permute.xlu0 %380
    %v383 = vmul.f32 %v372, %v381
    %385 = vrot.lane.b32.xlu0 %v383, 32
    %v386 = vpop.permute.xlu0 %385
    %v388 = vadd.f32 %v378, %v386
    %v389 = vtanh.pop %v388
    %391 = vrot.lane.b32.xlu0 %v389, 64
    %v392 = vpop.permute.xlu0 %391
    %v394 = vmul.f32 %v372, %v392
    %395 = vmatpush.bf16.msra.mxu0 0
    %396 = vmatpush.bf16.msra.mxu0 0
    %397 = vmatpush.bf16.msra.mxu0 0
    %398 = vmatpush.bf16.msra.mxu0 0
    %399 = vmatpush.bf16.msra.mxu0 0
    %400 = vmatpush.bf16.msra.mxu0 0
    %401 = vmatpush.bf16.msra.mxu0 %v242
    %402 = vmatpush.bf16.msra.mxu0 %v241
    %403 = vmatmul.bf16.gmra.mxu0 %v338
    %v404 = vpop.f32.mrf.mxu0
    %v405 = vadd.f32 %v111, %v404
    %v406 = vpop.f32.mrf.mxu0
    %407 = vdwg.mxu0
    %v408 = vxor.u32 %v405, 2147483648
    %v409 = vmul.f32 %v408, 1.442695
    %v410 = vpow.pop %v409
    %v411 = vadd.f32 %v410, 1.0
    %v412 = vrcp.pop %v411
    %v413 = vmul.f32 %v411, %v412
    %v414 = vsub.f32 1.0, %v413
    %v415 = vmul.f32 %v412, %v414
    %v416 = vadd.f32 %v412, %v415
    %vm417 = vweird.f32 %v411
    %vm418 = vweird.f32 %v412
    %vm419 = vmor %vm417, %vm418
    %v420 = vsel %vm419, %v412, %v416
    %v421 = vand.u32 2147483647, %v411
    %vm422 = vcmp.eq.f32.partialorder %v421, 8.507059e+37
    %v423 = vand.u32 %v411, 2147483648
    %v424 = vor.u32 1.1754944e-38, %v423
    %v425 = vsel %vm422, %v424, %v420
    %v426 = vmul.f32 1.0, %v425
    %v427 = vtanh.pop %v405
    %v428 = vmul.f32 %v426, %v294
    %430 = vrot.lane.b32.xlu0 %v427, 64
    %v431 = vpop.permute.xlu0 %430
    %v433 = vmul.f32 %v426, %v431
    %435 = vrot.lane.b32.xlu0 %v433, 32
    %v436 = vpop.permute.xlu0 %435
    %v438 = vadd.f32 %v428, %v436
    %v439 = vtanh.pop %v438
    %441 = vrot.lane.b32.xlu0 %v439, 64
    %v442 = vpop.permute.xlu0 %441
    %v444 = vmul.f32 %v426, %v442
    %v445 = vpack.c.bf16 %v444, %v444
    %v446 = vpack.c.bf16 %v394, %v394
    %448 = vrot.lane.b32.xlu0 %v446, 32
    %v449 = vpop.permute.xlu0 %448
    %v451 = vsel %vm185, %v449, 0
    %453 = vmatpush.bf16.msra.mxu0 0
    %454 = vmatpush.bf16.msra.mxu0 0
    %455 = vmatpush.bf16.msra.mxu0 0
    %456 = vmatpush.bf16.msra.mxu0 0
    %457 = vmatpush.bf16.msra.mxu0 0
    %458 = vmatpush.bf16.msra.mxu0 0
    %459 = vmatpush.bf16.msra.mxu0 %v315
    %460 = vmatpush.bf16.msra.mxu0 %v314
    %461 = vmatmul.bf16.gmra.mxu0 %v451
    %v462 = vpop.f32.mrf.mxu0
    %v463 = vadd.f32 0.0, %v462
    %v464 = vpop.f32.mrf.mxu0
    %465 = vdwg.mxu0
    %467 = vrot.lane.b32.xlu0 %v445, 32
    %v468 = vpop.permute.xlu0 %467
    %v470 = vsel %vm185, %v468, 0
    %472 = vmatpush.bf16.msra.mxu0 0
    %473 = vmatpush.bf16.msra.mxu0 0
    %474 = vmatpush.bf16.msra.mxu0 0
    %475 = vmatpush.bf16.msra.mxu0 0
    %476 = vmatpush.bf16.msra.mxu0 0
    %477 = vmatpush.bf16.msra.mxu0 0
    %478 = vmatpush.bf16.msra.mxu0 %v182
    %479 = vmatpush.bf16.msra.mxu0 %v181
    %480 = vmatmul.bf16.gmra.mxu0 %v470
    %v481 = vpop.f32.mrf.mxu0
    %v482 = vadd.f32 %v463, %v481
    %v483 = vpop.f32.mrf.mxu0
    %484 = vdwg.mxu0
    %v485 = vadd.f32 %v482, %v136
    %v486 = vxor.u32 %v485, 2147483648
    %v487 = vmul.f32 %v486, 1.442695
    %v488 = vpow.pop %v487
    %v489 = vadd.f32 %v488, 1.0
    %v490 = vrcp.pop %v489
    %v491 = vmul.f32 %v489, %v490
    %v492 = vsub.f32 1.0, %v491
    %v493 = vmul.f32 %v490, %v492
    %v494 = vadd.f32 %v490, %v493
    %vm495 = vweird.f32 %v489
    %vm496 = vweird.f32 %v490
    %vm497 = vmor %vm495, %vm496
    %v498 = vsel %vm497, %v490, %v494
    %v499 = vand.u32 2147483647, %v489
    %vm500 = vcmp.eq.f32.partialorder %v499, 8.507059e+37
    %v501 = vand.u32 %v489, 2147483648
    %v502 = vor.u32 1.1754944e-38, %v501
    %v503 = vsel %vm500, %v502, %v498
    %v504 = vmul.f32 1.0, %v503
    %v505 = vtanh.pop %v485
    %v506 = vmul.f32 %v504, %v388
    %508 = vrot.lane.b32.xlu0 %v505, 64
    %v509 = vpop.permute.xlu0 %508
    %v511 = vmul.f32 %v504, %v509
    %513 = vrot.lane.b32.xlu0 %v511, 32
    %v514 = vpop.permute.xlu0 %513
    %v516 = vadd.f32 %v506, %v514
    %v517 = vtanh.pop %v516
    %519 = vrot.lane.b32.xlu0 %v517, 64
    %v520 = vpop.permute.xlu0 %519
    %v522 = vmul.f32 %v504, %v520
    %523 = vmatpush.bf16.msra.mxu0 0
    %524 = vmatpush.bf16.msra.mxu0 0
    %525 = vmatpush.bf16.msra.mxu0 0
    %526 = vmatpush.bf16.msra.mxu0 0
    %527 = vmatpush.bf16.msra.mxu0 0
    %528 = vmatpush.bf16.msra.mxu0 0
    %529 = vmatpush.bf16.msra.mxu0 %v242
    %530 = vmatpush.bf16.msra.mxu0 %v241
    %531 = vmatmul.bf16.gmra.mxu0 %v470
    %v532 = vpop.f32.mrf.mxu0
    %v533 = vadd.f32 %v112, %v532
    %v534 = vpop.f32.mrf.mxu0
    %535 = vdwg.mxu0
    %v536 = vxor.u32 %v533, 2147483648
    %v537 = vmul.f32 %v536, 1.442695
    %v538 = vpow.pop %v537
    %v539 = vadd.f32 %v538, 1.0
    %v540 = vrcp.pop %v539
    %v541 = vmul.f32 %v539, %v540
    %v542 = vsub.f32 1.0, %v541
    %v543 = vmul.f32 %v540, %v542
    %v544 = vadd.f32 %v540, %v543
    %vm545 = vweird.f32 %v539
    %vm546 = vweird.f32 %v540
    %vm547 = vmor %vm545, %vm546
    %v548 = vsel %vm547, %v540, %v544
    %v549 = vand.u32 2147483647, %v539
    %vm550 = vcmp.eq.f32.partialorder %v549, 8.507059e+37
    %v551 = vand.u32 %v539, 2147483648
    %v552 = vor.u32 1.1754944e-38, %v551
    %v553 = vsel %vm550, %v552, %v548
    %v554 = vmul.f32 1.0, %v553
    %v555 = vtanh.pop %v533
    %v556 = vmul.f32 %v554, %v438
    %558 = vrot.lane.b32.xlu0 %v555, 64
    %v559 = vpop.permute.xlu0 %558
    %v561 = vmul.f32 %v554, %v559
    %563 = vrot.lane.b32.xlu0 %v561, 32
    %v564 = vpop.permute.xlu0 %563
    %v566 = vadd.f32 %v556, %v564
    %v567 = vtanh.pop %v566
    %569 = vrot.lane.b32.xlu0 %v567, 64
    %v570 = vpop.permute.xlu0 %569
    %v572 = vmul.f32 %v554, %v570
    %v573 = vpack.c.bf16 %v572, %v572
    %v574 = vpack.c.bf16 %v522, %v522
    %576 = vrot.lane.b32.xlu0 %v574, 32
    %v577 = vpop.permute.xlu0 %576
    %v579 = vsel %vm185, %v577, 0
    %581 = vmatpush.bf16.msra.mxu0 0
    %582 = vmatpush.bf16.msra.mxu0 0
    %583 = vmatpush.bf16.msra.mxu0 0
    %584 = vmatpush.bf16.msra.mxu0 0
    %585 = vmatpush.bf16.msra.mxu0 0
    %586 = vmatpush.bf16.msra.mxu0 0
    %587 = vmatpush.bf16.msra.mxu0 %v315
    %588 = vmatpush.bf16.msra.mxu0 %v314
    %589 = vmatmul.bf16.gmra.mxu0 %v579
    %v590 = vpop.f32.mrf.mxu0
    %v591 = vadd.f32 0.0, %v590
    %v592 = vpop.f32.mrf.mxu0
    %593 = vdwg.mxu0
    %595 = vrot.lane.b32.xlu0 %v573, 32
    %v596 = vpop.permute.xlu0 %595
    %v598 = vsel %vm185, %v596, 0
    %600 = vmatpush.bf16.msra.mxu0 0
    %601 = vmatpush.bf16.msra.mxu0 0
    %602 = vmatpush.bf16.msra.mxu0 0
    %603 = vmatpush.bf16.msra.mxu0 0
    %604 = vmatpush.bf16.msra.mxu0 0
    %605 = vmatpush.bf16.msra.mxu0 0
    %606 = vmatpush.bf16.msra.mxu0 %v182
    %607 = vmatpush.bf16.msra.mxu0 %v181
    %608 = vmatmul.bf16.gmra.mxu0 %v598
    %v609 = vpop.f32.mrf.mxu0
    %v610 = vadd.f32 %v591, %v609
    %v611 = vpop.f32.mrf.mxu0
    %612 = vdwg.mxu0
    %v613 = vadd.f32 %v610, %v136
    %v614 = vxor.u32 %v613, 2147483648
    %v615 = vmul.f32 %v614, 1.442695
    %v616 = vpow.pop %v615
    %v617 = vadd.f32 %v616, 1.0
    %v618 = vrcp.pop %v617
    %v619 = vmul.f32 %v617, %v618
    %v620 = vsub.f32 1.0, %v619
    %v621 = vmul.f32 %v618, %v620
    %v622 = vadd.f32 %v618, %v621
    %vm623 = vweird.f32 %v617
    %vm624 = vweird.f32 %v618
    %vm625 = vmor %vm623, %vm624
    %v626 = vsel %vm625, %v618, %v622
    %v627 = vand.u32 2147483647, %v617
    %vm628 = vcmp.eq.f32.partialorder %v627, 8.507059e+37
    %v629 = vand.u32 %v617, 2147483648
    %v630 = vor.u32 1.1754944e-38, %v629
    %v631 = vsel %vm628, %v630, %v626
    %v632 = vmul.f32 1.0, %v631
    %v633 = vtanh.pop %v613
    %v634 = vmul.f32 %v632, %v516
    %636 = vrot.lane.b32.xlu0 %v633, 64
    %v637 = vpop.permute.xlu0 %636
    %v639 = vmul.f32 %v632, %v637
    %641 = vrot.lane.b32.xlu0 %v639, 32
    %v642 = vpop.permute.xlu0 %641
    %v644 = vadd.f32 %v634, %v642
    %v645 = vtanh.pop %v644
    %647 = vrot.lane.b32.xlu0 %v645, 64
    %v648 = vpop.permute.xlu0 %647
    %v650 = vmul.f32 %v632, %v648
    %651 = vmatpush.bf16.msra.mxu0 0
    %652 = vmatpush.bf16.msra.mxu0 0
    %653 = vmatpush.bf16.msra.mxu0 0
    %654 = vmatpush.bf16.msra.mxu0 0
    %655 = vmatpush.bf16.msra.mxu0 0
    %656 = vmatpush.bf16.msra.mxu0 0
    %657 = vmatpush.bf16.msra.mxu0 %v242
    %658 = vmatpush.bf16.msra.mxu0 %v241
    %659 = vmatmul.bf16.gmra.mxu0 %v598
    %v660 = vpop.f32.mrf.mxu0
    %v661 = vadd.f32 %v106, %v660
    %v662 = vpop.f32.mrf.mxu0
    %663 = vdwg.mxu0
    %v664 = vxor.u32 %v661, 2147483648
    %v665 = vmul.f32 %v664, 1.442695
    %v666 = vpow.pop %v665
    %v667 = vadd.f32 %v666, 1.0
    %v668 = vrcp.pop %v667
    %v669 = vmul.f32 %v667, %v668
    %v670 = vsub.f32 1.0, %v669
    %v671 = vmul.f32 %v668, %v670
    %v672 = vadd.f32 %v668, %v671
    %vm673 = vweird.f32 %v667
    %vm674 = vweird.f32 %v668
    %vm675 = vmor %vm673, %vm674
    %v676 = vsel %vm675, %v668, %v672
    %v677 = vand.u32 2147483647, %v667
    %vm678 = vcmp.eq.f32.partialorder %v677, 8.507059e+37
    %v679 = vand.u32 %v667, 2147483648
    %v680 = vor.u32 1.1754944e-38, %v679
    %v681 = vsel %vm678, %v680, %v676
    %v682 = vmul.f32 1.0, %v681
    %v683 = vtanh.pop %v661
    %v684 = vmul.f32 %v682, %v566
    %686 = vrot.lane.b32.xlu0 %v683, 64
    %v687 = vpop.permute.xlu0 %686
    %v689 = vmul.f32 %v682, %v687
    %691 = vrot.lane.b32.xlu0 %v689, 32
    %v692 = vpop.permute.xlu0 %691
    %v694 = vadd.f32 %v684, %v692
    %v695 = vtanh.pop %v694
    %697 = vrot.lane.b32.xlu0 %v695, 64
    %v698 = vpop.permute.xlu0 %697
    %v700 = vmul.f32 %v682, %v698
    %v701 = vpack.c.bf16 %v700, %v700
    %v702 = vpack.c.bf16 %v650, %v650
    %704 = vrot.lane.b32.xlu0 %v702, 32
    %v705 = vpop.permute.xlu0 %704
    %v707 = vsel %vm185, %v705, 0
    %709 = vmatpush.bf16.msra.mxu0 0
    %710 = vmatpush.bf16.msra.mxu0 0
    %711 = vmatpush.bf16.msra.mxu0 0
    %712 = vmatpush.bf16.msra.mxu0 0
    %713 = vmatpush.bf16.msra.mxu0 0
    %714 = vmatpush.bf16.msra.mxu0 0
    %715 = vmatpush.bf16.msra.mxu0 %v315
    %716 = vmatpush.bf16.msra.mxu0 %v314
    %717 = vmatmul.bf16.gmra.mxu0 %v707
    %v718 = vpop.f32.mrf.mxu0
    %v719 = vadd.f32 0.0, %v718
    %v720 = vpop.f32.mrf.mxu0
    %721 = vdwg.mxu0
    %723 = vrot.lane.b32.xlu0 %v701, 32
    %v724 = vpop.permute.xlu0 %723
    %v726 = vsel %vm185, %v724, 0
    %728 = vmatpush.bf16.msra.mxu0 0
    %729 = vmatpush.bf16.msra.mxu0 0
    %730 = vmatpush.bf16.msra.mxu0 0
    %731 = vmatpush.bf16.msra.mxu0 0
    %732 = vmatpush.bf16.msra.mxu0 0
    %733 = vmatpush.bf16.msra.mxu0 0
    %734 = vmatpush.bf16.msra.mxu0 %v182
    %735 = vmatpush.bf16.msra.mxu0 %v181
    %736 = vmatmul.bf16.gmra.mxu0 %v726
    %v737 = vpop.f32.mrf.mxu0
    %v738 = vadd.f32 %v719, %v737
    %v739 = vpop.f32.mrf.mxu0
    %740 = vdwg.mxu0
    %v741 = vadd.f32 %v738, %v136
    %v742 = vxor.u32 %v741, 2147483648
    %v743 = vmul.f32 %v742, 1.442695
    %v744 = vpow.pop %v743
    %v745 = vadd.f32 %v744, 1.0
    %v746 = vrcp.pop %v745
    %v747 = vmul.f32 %v745, %v746
    %v748 = vsub.f32 1.0, %v747
    %v749 = vmul.f32 %v746, %v748
    %v750 = vadd.f32 %v746, %v749
    %vm751 = vweird.f32 %v745
    %vm752 = vweird.f32 %v746
    %vm753 = vmor %vm751, %vm752
    %v754 = vsel %vm753, %v746, %v750
    %v755 = vand.u32 2147483647, %v745
    %vm756 = vcmp.eq.f32.partialorder %v755, 8.507059e+37
    %v757 = vand.u32 %v745, 2147483648
    %v758 = vor.u32 1.1754944e-38, %v757
    %v759 = vsel %vm756, %v758, %v754
    %v760 = vmul.f32 1.0, %v759
    %v761 = vtanh.pop %v741
    %v762 = vmul.f32 %v760, %v644
    %764 = vrot.lane.b32.xlu0 %v761, 64
    %v765 = vpop.permute.xlu0 %764
    %v767 = vmul.f32 %v760, %v765
    %769 = vrot.lane.b32.xlu0 %v767, 32
    %v770 = vpop.permute.xlu0 %769
    %v772 = vadd.f32 %v762, %v770
    %v773 = vtanh.pop %v772
    %775 = vrot.lane.b32.xlu0 %v773, 64
    %v776 = vpop.permute.xlu0 %775
    %v778 = vmul.f32 %v760, %v776
    %779 = vmatpush.bf16.msra.mxu0 0
    %780 = vmatpush.bf16.msra.mxu0 0
    %781 = vmatpush.bf16.msra.mxu0 0
    %782 = vmatpush.bf16.msra.mxu0 0
    %783 = vmatpush.bf16.msra.mxu0 0
    %784 = vmatpush.bf16.msra.mxu0 0
    %785 = vmatpush.bf16.msra.mxu0 %v242
    %786 = vmatpush.bf16.msra.mxu0 %v241
    %787 = vmatmul.bf16.gmra.mxu0 %v726
    %v788 = vpop.f32.mrf.mxu0
    %v789 = vadd.f32 %v113, %v788
    %v790 = vpop.f32.mrf.mxu0
    %791 = vdwg.mxu0
    %v792 = vxor.u32 %v789, 2147483648
    %v793 = vmul.f32 %v792, 1.442695
    %v794 = vpow.pop %v793
    %v795 = vadd.f32 %v794, 1.0
    %v796 = vrcp.pop %v795
    %v797 = vmul.f32 %v795, %v796
    %v798 = vsub.f32 1.0, %v797
    %v799 = vmul.f32 %v796, %v798
    %v800 = vadd.f32 %v796, %v799
    %vm801 = vweird.f32 %v795
    %vm802 = vweird.f32 %v796
    %vm803 = vmor %vm801, %vm802
    %v804 = vsel %vm803, %v796, %v800
    %v805 = vand.u32 2147483647, %v795
    %vm806 = vcmp.eq.f32.partialorder %v805, 8.507059e+37
    %v807 = vand.u32 %v795, 2147483648
    %v808 = vor.u32 1.1754944e-38, %v807
    %v809 = vsel %vm806, %v808, %v804
    %v810 = vmul.f32 1.0, %v809
    %v811 = vtanh.pop %v789
    %v812 = vmul.f32 %v810, %v694
    %814 = vrot.lane.b32.xlu0 %v811, 64
    %v815 = vpop.permute.xlu0 %814
    %v817 = vmul.f32 %v810, %v815
    %819 = vrot.lane.b32.xlu0 %v817, 32
    %v820 = vpop.permute.xlu0 %819
    %v822 = vadd.f32 %v812, %v820
    %v823 = vtanh.pop %v822
    %825 = vrot.lane.b32.xlu0 %v823, 64
    %v826 = vpop.permute.xlu0 %825
    %v828 = vmul.f32 %v810, %v826
    %v829 = vpack.c.bf16 %v828, %v828
    %v830 = vpack.c.bf16 %v778, %v778
    %832 = vrot.lane.b32.xlu0 %v830, 32
    %v833 = vpop.permute.xlu0 %832
    %v835 = vsel %vm185, %v833, 0
    %837 = vmatpush.bf16.msra.mxu0 0
    %838 = vmatpush.bf16.msra.mxu0 0
    %839 = vmatpush.bf16.msra.mxu0 0
    %840 = vmatpush.bf16.msra.mxu0 0
    %841 = vmatpush.bf16.msra.mxu0 0
    %842 = vmatpush.bf16.msra.mxu0 0
    %843 = vmatpush.bf16.msra.mxu0 %v315
    %844 = vmatpush.bf16.msra.mxu0 %v314
    %845 = vmatmul.bf16.gmra.mxu0 %v835
    %v846 = vpop.f32.mrf.mxu0
    %v847 = vadd.f32 0.0, %v846
    %v848 = vpop.f32.mrf.mxu0
    %849 = vdwg.mxu0
    %851 = vrot.lane.b32.xlu0 %v829, 32
    %v852 = vpop.permute.xlu0 %851
    %v854 = vsel %vm185, %v852, 0
    %856 = vmatpush.bf16.msra.mxu0 0
    %857 = vmatpush.bf16.msra.mxu0 0
    %858 = vmatpush.bf16.msra.mxu0 0
    %859 = vmatpush.bf16.msra.mxu0 0
    %860 = vmatpush.bf16.msra.mxu0 0
    %861 = vmatpush.bf16.msra.mxu0 0
    %862 = vmatpush.bf16.msra.mxu0 %v182
    %863 = vmatpush.bf16.msra.mxu0 %v181
    %864 = vmatmul.bf16.gmra.mxu0 %v854
    %v865 = vpop.f32.mrf.mxu0
    %v866 = vadd.f32 %v847, %v865
    %v867 = vpop.f32.mrf.mxu0
    %868 = vdwg.mxu0
    %v869 = vadd.f32 %v866, %v136
    %v870 = vxor.u32 %v869, 2147483648
    %v871 = vmul.f32 %v870, 1.442695
    %v872 = vpow.pop %v871
    %v873 = vadd.f32 %v872, 1.0
    %v874 = vrcp.pop %v873
    %v875 = vmul.f32 %v873, %v874
    %v876 = vsub.f32 1.0, %v875
    %v877 = vmul.f32 %v874, %v876
    %v878 = vadd.f32 %v874, %v877
    %vm879 = vweird.f32 %v873
    %vm880 = vweird.f32 %v874
    %vm881 = vmor %vm879, %vm880
    %v882 = vsel %vm881, %v874, %v878
    %v883 = vand.u32 2147483647, %v873
    %vm884 = vcmp.eq.f32.partialorder %v883, 8.507059e+37
    %v885 = vand.u32 %v873, 2147483648
    %v886 = vor.u32 1.1754944e-38, %v885
    %v887 = vsel %vm884, %v886, %v882
    %v888 = vmul.f32 1.0, %v887
    %v889 = vtanh.pop %v869
    %v890 = vmul.f32 %v888, %v772
    %892 = vrot.lane.b32.xlu0 %v889, 64
    %v893 = vpop.permute.xlu0 %892
    %v895 = vmul.f32 %v888, %v893
    %897 = vrot.lane.b32.xlu0 %v895, 32
    %v898 = vpop.permute.xlu0 %897
    %v900 = vadd.f32 %v890, %v898
    %v901 = vtanh.pop %v900
    %903 = vrot.lane.b32.xlu0 %v901, 64
    %v904 = vpop.permute.xlu0 %903
    %v906 = vmul.f32 %v888, %v904
    %907 = vmatpush.bf16.msra.mxu0 0
    %908 = vmatpush.bf16.msra.mxu0 0
    %909 = vmatpush.bf16.msra.mxu0 0
    %910 = vmatpush.bf16.msra.mxu0 0
    %911 = vmatpush.bf16.msra.mxu0 0
    %912 = vmatpush.bf16.msra.mxu0 0
    %913 = vmatpush.bf16.msra.mxu0 %v242
    %914 = vmatpush.bf16.msra.mxu0 %v241
    %915 = vmatmul.bf16.gmra.mxu0 %v854
    %v916 = vpop.f32.mrf.mxu0
    %v917 = vadd.f32 %v114, %v916
    %v918 = vpop.f32.mrf.mxu0
    %919 = vdwg.mxu0
    %v920 = vxor.u32 %v917, 2147483648
    %v921 = vmul.f32 %v920, 1.442695
    %v922 = vpow.pop %v921
    %v923 = vadd.f32 %v922, 1.0
    %v924 = vrcp.pop %v923
    %v925 = vmul.f32 %v923, %v924
    %v926 = vsub.f32 1.0, %v925
    %v927 = vmul.f32 %v924, %v926
    %v928 = vadd.f32 %v924, %v927
    %vm929 = vweird.f32 %v923
    %vm930 = vweird.f32 %v924
    %vm931 = vmor %vm929, %vm930
    %v932 = vsel %vm931, %v924, %v928
    %v933 = vand.u32 2147483647, %v923
    %vm934 = vcmp.eq.f32.partialorder %v933, 8.507059e+37
    %v935 = vand.u32 %v923, 2147483648
    %v936 = vor.u32 1.1754944e-38, %v935
    %v937 = vsel %vm934, %v936, %v932
    %v938 = vmul.f32 1.0, %v937
    %v939 = vtanh.pop %v917
    %v940 = vmul.f32 %v938, %v822
    %942 = vrot.lane.b32.xlu0 %v939, 64
    %v943 = vpop.permute.xlu0 %942
    %v945 = vmul.f32 %v938, %v943
    %947 = vrot.lane.b32.xlu0 %v945, 32
    %v948 = vpop.permute.xlu0 %947
    %v950 = vadd.f32 %v940, %v948
    %v951 = vtanh.pop %v950
    %953 = vrot.lane.b32.xlu0 %v951, 64
    %v954 = vpop.permute.xlu0 %953
    %v956 = vmul.f32 %v938, %v954
    %v957 = vpack.c.bf16 %v956, %v956
    %v958 = vpack.c.bf16 %v906, %v906
    %960 = vrot.lane.b32.xlu0 %v958, 32
    %v961 = vpop.permute.xlu0 %960
    %v963 = vsel %vm185, %v961, 0
    %965 = vmatpush.bf16.msra.mxu0 0
    %966 = vmatpush.bf16.msra.mxu0 0
    %967 = vmatpush.bf16.msra.mxu0 0
    %968 = vmatpush.bf16.msra.mxu0 0
    %969 = vmatpush.bf16.msra.mxu0 0
    %970 = vmatpush.bf16.msra.mxu0 0
    %971 = vmatpush.bf16.msra.mxu0 %v315
    %972 = vmatpush.bf16.msra.mxu0 %v314
    %973 = vmatmul.bf16.gmra.mxu0 %v963
    %v974 = vpop.f32.mrf.mxu0
    %v975 = vadd.f32 0.0, %v974
    %v976 = vpop.f32.mrf.mxu0
    %977 = vdwg.mxu0
    %979 = vrot.lane.b32.xlu0 %v957, 32
    %v980 = vpop.permute.xlu0 %979
    %v982 = vsel %vm185, %v980, 0
    %984 = vmatpush.bf16.msra.mxu0 0
    %985 = vmatpush.bf16.msra.mxu0 0
    %986 = vmatpush.bf16.msra.mxu0 0
    %987 = vmatpush.bf16.msra.mxu0 0
    %988 = vmatpush.bf16.msra.mxu0 0
    %989 = vmatpush.bf16.msra.mxu0 0
    %990 = vmatpush.bf16.msra.mxu0 %v182
    %991 = vmatpush.bf16.msra.mxu0 %v181
    %992 = vmatmul.bf16.gmra.mxu0 %v982
    %v993 = vpop.f32.mrf.mxu0
    %v994 = vadd.f32 %v975, %v993
    %v995 = vpop.f32.mrf.mxu0
    %996 = vdwg.mxu0
    %v997 = vadd.f32 %v994, %v136
    %v998 = vxor.u32 %v997, 2147483648
    %v999 = vmul.f32 %v998, 1.442695
    %v1000 = vpow.pop %v999
    %v1001 = vadd.f32 %v1000, 1.0
    %v1002 = vrcp.pop %v1001
    %v1003 = vmul.f32 %v1001, %v1002
    %v1004 = vsub.f32 1.0, %v1003
    %v1005 = vmul.f32 %v1002, %v1004
    %v1006 = vadd.f32 %v1002, %v1005
    %vm1007 = vweird.f32 %v1001
    %vm1008 = vweird.f32 %v1002
    %vm1009 = vmor %vm1007, %vm1008
    %v1010 = vsel %vm1009, %v1002, %v1006
    %v1011 = vand.u32 2147483647, %v1001
    %vm1012 = vcmp.eq.f32.partialorder %v1011, 8.507059e+37
    %v1013 = vand.u32 %v1001, 2147483648
    %v1014 = vor.u32 1.1754944e-38, %v1013
    %v1015 = vsel %vm1012, %v1014, %v1010
    %v1016 = vmul.f32 1.0, %v1015
    %v1017 = vtanh.pop %v997
    %v1018 = vmul.f32 %v1016, %v900
    %1020 = vrot.lane.b32.xlu0 %v1017, 64
    %v1021 = vpop.permute.xlu0 %1020
    %v1023 = vmul.f32 %v1016, %v1021
    %1025 = vrot.lane.b32.xlu0 %v1023, 32
    %v1026 = vpop.permute.xlu0 %1025
    %v1028 = vadd.f32 %v1018, %v1026
    %v1029 = vtanh.pop %v1028
    %1031 = vrot.lane.b32.xlu0 %v1029, 64
    %v1032 = vpop.permute.xlu0 %1031
    %v1034 = vmul.f32 %v1016, %v1032
    %1035 = vmatpush.bf16.msra.mxu0 0
    %1036 = vmatpush.bf16.msra.mxu0 0
    %1037 = vmatpush.bf16.msra.mxu0 0
    %1038 = vmatpush.bf16.msra.mxu0 0
    %1039 = vmatpush.bf16.msra.mxu0 0
    %1040 = vmatpush.bf16.msra.mxu0 0
    %1041 = vmatpush.bf16.msra.mxu0 %v242
    %1042 = vmatpush.bf16.msra.mxu0 %v241
    %1043 = vmatmul.bf16.gmra.mxu0 %v982
    %v1044 = vpop.f32.mrf.mxu0
    %v1045 = vadd.f32 %v115, %v1044
    %v1046 = vpop.f32.mrf.mxu0
    %1047 = vdwg.mxu0
    %v1048 = vxor.u32 %v1045, 2147483648
    %v1049 = vmul.f32 %v1048, 1.442695
    %v1050 = vpow.pop %v1049
    %v1051 = vadd.f32 %v1050, 1.0
    %v1052 = vrcp.pop %v1051
    %v1053 = vmul.f32 %v1051, %v1052
    %v1054 = vsub.f32 1.0, %v1053
    %v1055 = vmul.f32 %v1052, %v1054
    %v1056 = vadd.f32 %v1052, %v1055
    %vm1057 = vweird.f32 %v1051
    %vm1058 = vweird.f32 %v1052
    %vm1059 = vmor %vm1057, %vm1058
    %v1060 = vsel %vm1059, %v1052, %v1056
    %v1061 = vand.u32 2147483647, %v1051
    %vm1062 = vcmp.eq.f32.partialorder %v1061, 8.507059e+37
    %v1063 = vand.u32 %v1051, 2147483648
    %v1064 = vor.u32 1.1754944e-38, %v1063
    %v1065 = vsel %vm1062, %v1064, %v1060
    %v1066 = vmul.f32 1.0, %v1065
    %v1067 = vtanh.pop %v1045
    %v1068 = vmul.f32 %v1066, %v950
    %1070 = vrot.lane.b32.xlu0 %v1067, 64
    %v1071 = vpop.permute.xlu0 %1070
    %v1073 = vmul.f32 %v1066, %v1071
    %1075 = vrot.lane.b32.xlu0 %v1073, 32
    %v1076 = vpop.permute.xlu0 %1075
    %v1078 = vadd.f32 %v1068, %v1076
    %v1079 = vtanh.pop %v1078
    %1081 = vrot.lane.b32.xlu0 %v1079, 64
    %v1082 = vpop.permute.xlu0 %1081
    %v1084 = vmul.f32 %v1066, %v1082
    %v1085 = vpack.c.bf16 %v1084, %v1084
    %v1086 = vpack.c.bf16 %v1034, %v1034
    %1088 = vrot.lane.b32.xlu0 %v1086, 32
    %v1089 = vpop.permute.xlu0 %1088
    %v1091 = vsel %vm185, %v1089, 0
    %1093 = vmatpush.bf16.msra.mxu0 0
    %1094 = vmatpush.bf16.msra.mxu0 0
    %1095 = vmatpush.bf16.msra.mxu0 0
    %1096 = vmatpush.bf16.msra.mxu0 0
    %1097 = vmatpush.bf16.msra.mxu0 0
    %1098 = vmatpush.bf16.msra.mxu0 0
    %1099 = vmatpush.bf16.msra.mxu0 %v315
    %1100 = vmatpush.bf16.msra.mxu0 %v314
    %1101 = vmatmul.bf16.gmra.mxu0 %v1091
    %v1102 = vpop.f32.mrf.mxu0
    %v1103 = vadd.f32 0.0, %v1102
    %v1104 = vpop.f32.mrf.mxu0
    %1105 = vdwg.mxu0
    %1107 = vrot.lane.b32.xlu0 %v1085, 32
    %v1108 = vpop.permute.xlu0 %1107
    %v1110 = vsel %vm185, %v1108, 0
    %1112 = vmatpush.bf16.msra.mxu0 0
    %1113 = vmatpush.bf16.msra.mxu0 0
    %1114 = vmatpush.bf16.msra.mxu0 0
    %1115 = vmatpush.bf16.msra.mxu0 0
    %1116 = vmatpush.bf16.msra.mxu0 0
    %1117 = vmatpush.bf16.msra.mxu0 0
    %1118 = vmatpush.bf16.msra.mxu0 %v182
    %1119 = vmatpush.bf16.msra.mxu0 %v181
    %1120 = vmatmul.bf16.gmra.mxu0 %v1110
    %v1121 = vpop.f32.mrf.mxu0
    %v1122 = vadd.f32 %v1103, %v1121
    %v1123 = vpop.f32.mrf.mxu0
    %1124 = vdwg.mxu0
    %v1125 = vadd.f32 %v1122, %v136
    %v1126 = vxor.u32 %v1125, 2147483648
    %v1127 = vmul.f32 %v1126, 1.442695
    %v1128 = vpow.pop %v1127
    %v1129 = vadd.f32 %v1128, 1.0
    %v1130 = vrcp.pop %v1129
    %v1131 = vmul.f32 %v1129, %v1130
    %v1132 = vsub.f32 1.0, %v1131
    %v1133 = vmul.f32 %v1130, %v1132
    %v1134 = vadd.f32 %v1130, %v1133
    %vm1135 = vweird.f32 %v1129
    %vm1136 = vweird.f32 %v1130
    %vm1137 = vmor %vm1135, %vm1136
    %v1138 = vsel %vm1137, %v1130, %v1134
    %v1139 = vand.u32 2147483647, %v1129
    %vm1140 = vcmp.eq.f32.partialorder %v1139, 8.507059e+37
    %v1141 = vand.u32 %v1129, 2147483648
    %v1142 = vor.u32 1.1754944e-38, %v1141
    %v1143 = vsel %vm1140, %v1142, %v1138
    %v1144 = vmul.f32 1.0, %v1143
    %v1145 = vtanh.pop %v1125
    %v1146 = vmul.f32 %v1144, %v1028
    %1148 = vrot.lane.b32.xlu0 %v1145, 64
    %v1149 = vpop.permute.xlu0 %1148
    %v1151 = vmul.f32 %v1144, %v1149
    %1153 = vrot.lane.b32.xlu0 %v1151, 32
    %v1154 = vpop.permute.xlu0 %1153
    %v1156 = vadd.f32 %v1146, %v1154
    %v1157 = vtanh.pop %v1156
    %1159 = vrot.lane.b32.xlu0 %v1157, 64
    %v1160 = vpop.permute.xlu0 %1159
    %v1162 = vmul.f32 %v1144, %v1160
    %v1163 = vpack.c.bf16 %v1162, %v1162
    %v1164 = vld [vmem:[%s7] sm:$0xf]
    %v1165 = vld [vmem:[%s7 + $0x4] sm:$0xf]
    %v1166 = vld [vmem:[%s7 + $0x8] sm:$0xf]
    %v1167 = vld [vmem:[%s7 + $0xc] sm:$0xf]
    %v1168 = vld [vmem:[#allocation7] sm:$0x1]
    %v1170 = vperm.slane %v1168, 0
    %1173 = vrot.lane.b32.xlu0 %v1163, 32
    %v1174 = vpop.permute.xlu0 %1173
    %v1179 = vunpack.c.l.b16 %v1164
    %v1180 = vunpack.c.l.b16 %v1165
    %v1181 = vunpack.c.l.b16 %v1166
    %v1182 = vunpack.c.l.b16 %v1167
    %v1183 = vpack.c.b16 %v1180, %v1179
    %v1184 = vpack.c.b16 %v1182, %v1181
    %v1188 = vsel %vm185, %v1174, 0
    %1190 = vmatpush.bf16.msra.mxu0 0
    %1191 = vmatpush.bf16.msra.mxu0 0
    %1192 = vmatpush.bf16.msra.mxu0 0
    %1193 = vmatpush.bf16.msra.mxu0 0
    %1194 = vmatpush.bf16.msra.mxu0 0
    %1195 = vmatpush.bf16.msra.mxu0 0
    %1196 = vmatpush.bf16.msra.mxu0 %v1184
    %1197 = vmatpush.bf16.msra.mxu0 %v1183
    %1198 = vmatmul.bf16.gmra.mxu0 %v1188
    %v1199 = vpop.f32.mrf.mxu0
    %v1200 = vadd.f32 %v1170, %v1199
    %v1201 = vpop.f32.mrf.mxu0
    %1202 = vdwg.mxu0
    %vm1203 = vcmask 25600
    %1204 = vst.msk [vmem:[#allocation8] sm:$0x3] %vm1203, %v1200
    // Predicated region
    $region50: #{rnn_forward.1} parent=1 // pred_check
      _
    $region51: #{rnn_forward.1} parent=1 // pred_check_branch
      %1206 = sbr.rel (0) target = $region53
    $region52: #{rnn_forward.1} parent=1 // pred_region
      %1208 = vsyncadd [#allocation4], 0
      %s1210 = sshll.u32 [#allocation8], 4
      %s1211 = int_to_ptr.vmem [resolvable:$true] %s1210
      %s1212 = sshll.u32 %s9, 4
      %s1213 = int_to_ptr.hbm [resolvable:$true] %s1212
      %1215 = dma.vmem_to_hbm [thread:$0]  %s1211, 32, %s1213, [#allocation4]
    $region53: #{rnn_forward.1} parent=1 // pred_fallthru
      _
    // Predicated region
    $region54: #{rnn_forward.1} parent=1 // pred_check
      _
    $region55: #{rnn_forward.1} parent=1 // pred_check_branch
      %1217 = sbr.rel (0) target = $region57
    $region56: #{rnn_forward.1} parent=1 // pred_region
      %1219 = dma.done [#allocation4], 32
    $region57: #{rnn_forward.1} parent=1 // pred_fallthru
      _
    %1220 = vsyncpa [#allocation3], 1
    %1221 = vsyncpa [#allocation6], 1
    %1222 = vsyncpa [#allocation4], 1

</llo_original>
